<compile_context>
chip_gen: v5e
topology: v5e:2x2
jax: 0.10.0
libtpu: 0.0.40
codegen_flags: <defaults>
</compile_context>

<pallas_src>
import functools

import jax
import jax.numpy as jnp
import numpy as np
from jax.experimental import pallas as pl
from jax.experimental.pallas import tpu as pltpu


# ----------------------------- shared math ----------------------------------
def _xavier_uniform(key, shape):
    # bound is symmetric in (fan_in, fan_out), so sampling directly in the
    # pre-transposed [in, out] layout gives the same distribution as PyTorch.
    fan_a, fan_b = shape[-2], shape[-1]
    bound = (6.0 / (fan_a + fan_b)) ** 0.5
    return jax.random.uniform(key, shape, jnp.float32, -bound, bound)


def _layernorm(v, w, b, eps=1e-5):
    mu = jnp.mean(v, axis=-1, keepdims=True)
    var = jnp.mean((v - mu) ** 2, axis=-1, keepdims=True)
    return (v - mu) * jax.lax.rsqrt(var + eps) * w + b


# --------------------------- per-generation tuning ---------------------------
def _tpu_tuning():
    """Returns (num_tensorcores, vmem_limit_bytes_or_None, auto_weight_dtype)."""
    try:
        kind = jax.devices()[0].device_kind.lower()
    except Exception:
        kind = ""
    if "v7" in kind:
        # 2 TensorCores/chip, 64 MiB VMEM per TC -> leave headroom; bf16 default.
        return 2, 48 * 1024 * 1024, jnp.bfloat16
    if ("v6" in kind) or ("v5e" in kind) or ("v5 lite" in kind) or ("v5litepod" in kind):
        # single TensorCore, 128 MiB physical VMEM.
        return 1, 100 * 1024 * 1024, jnp.float32
    return 1, None, jnp.float32          # conservative default elsewhere


# --------------------------- Pallas kernels ----------------------------------
def transformer_stack_kernel(emb_ref, mask_ref, lnf_ref, wqkv_ref, wproj_ref,
                             vecs_ref, w1_ref, b1_ref, w2_ref,
                             pooled_ref, x_scr, attn_scr, *, n_head, pool):
    """Grid = (batch_tiles, n_layer).

    The residual stream is resident in VMEM scratch across the ("arbitrary")
    layer axis; the only HBM output is the pooled [bb,1,E] vector, written at
    the final layer after ln_f.
    """
    layer = pl.program_id(1)
    n_layers = pl.num_programs(1)

    @pl.when(layer == 0)
    def _():
        x_scr[...] = emb_ref[...]

    x = x_scr[...]                          # [bb, S, E] f32 residual stream
    bb, S, E = x.shape
    H = n_head
    hs = E // H
    scale = float(E) ** -0.5                # torch Head scales by embed_dim

    # Per-layer packed vectors / weights (weights are [in, out]).
    vecs = vecs_ref[0]                      # [6, E]
    ln1_w, ln1_b = vecs[0], vecs[1]
    bproj = vecs[2]
    ln2_w, ln2_b = vecs[3], vecs[4]
    b2 = vecs[5]
    wqkv = wqkv_ref[0]                      # [E, 3E]
    wproj = wproj_ref[0]                    # [E, E]
    w1 = w1_ref[0]                          # [E, 4E]
    b1 = b1_ref[0]                          # [1, 4E]
    w2 = w2_ref[0]                          # [4E, E]
    cdt = wqkv.dtype                        # MXU input dtype (f32 or bf16)

    # Additive attention-mask bias, computed ONCE per layer (not per head).
    mask_bias = jnp.where(mask_ref[...] == 0.0, -1e30, 0.0)   # [bb, 1, S]

    # ---- multi-head self-attention (pre-LN), fused QKV projection ----
    xn = _layernorm(x, ln1_w, ln1_b)
    qkv = jnp.dot(xn.reshape(bb * S, E).astype(cdt), wqkv,
                  preferred_element_type=jnp.float32)          # [bb*S, 3E] f32

    # TODO(synk): fold the per-head loop into a single two-batch-dim einsum
    # ('bqhd,bkhd->bhqk') once Mosaic dot_general lowering for multiple batch
    # dims is guaranteed; head outputs are written into a VMEM scratch at lane
    # offsets (no concatenate chain) in the meantime.
    for h in range(H):                      # static loop over heads
        qh = (qkv[:, h * hs:(h + 1) * hs] * scale) \
            .reshape(bb, S, hs).astype(cdt)
        kh = qkv[:, E + h * hs:E + (h + 1) * hs] \
            .reshape(bb, S, hs).astype(cdt)
        vh = qkv[:, 2 * E + h * hs:2 * E + (h + 1) * hs] \
            .reshape(bb, S, hs).astype(cdt)
        wei = jnp.einsum('bqd,bkd->bqk', qh, kh,
                         preferred_element_type=jnp.float32) + mask_bias
        wei = wei - jnp.max(wei, axis=-1, keepdims=True)
        p = jnp.exp(wei)
        denom = jnp.sum(p, axis=-1, keepdims=True)
        r = pl.reciprocal(denom, approx=True)     # EUP estimate (free slot)
        r = r * (2.0 - denom * r)                 # one Newton step -> ~f32 exact
        p = p * r
        attn_scr[:, :, h * hs:(h + 1) * hs] = jnp.einsum(
            'bqk,bkd->bqd', p.astype(cdt), vh,
            preferred_element_type=jnp.float32)

    attn = attn_scr[...]                                        # [bb, S, E]
    attn = (jnp.dot(attn.reshape(bb * S, E).astype(cdt), wproj,
                    preferred_element_type=jnp.float32) + bproj
            ).reshape(bb, S, E)
    x = x + attn

    # ---- feed-forward (pre-LN): Linear(E,4E) -> ReLU -> Linear(4E,E) ----
    # TODO(synk): for production E on v7x (64 MiB VMEM), tile W1/W2 along the
    # 4E axis with an inner pltpu.emit_pipeline instead of streaming them whole.
    xn2 = _layernorm(x, ln2_w, ln2_b)
    h1 = jnp.dot(xn2.reshape(bb * S, E).astype(cdt), w1,
                 preferred_element_type=jnp.float32) + b1
    h1 = jnp.maximum(h1, 0.0)
    y = (jnp.dot(h1.astype(cdt), w2,
                 preferred_element_type=jnp.float32) + b2).reshape(bb, S, E)
    x = x + y

    x_scr[...] = x

    # Final layer: apply ln_f and emit the already-pooled vector directly
    # (saves writing + re-reading the full [B,S,E] embeddings through HBM).
    @pl.when(layer == n_layers - 1)
    def _():
        xf = _layernorm(x, lnf_ref[0], lnf_ref[1])
        if pool:
            pooled_ref[...] = jnp.mean(xf, axis=1, keepdims=True)
        else:
            pooled_ref[...] = xf[:, S - 1:S, :]


def classifier_head_kernel(x_ref, wc1_ref, bc1_ref, wc2_ref, bc2_ref, out_ref):
    # classifier FeedFoward: Linear(E,4E) -> ReLU -> Linear(4E,C) (dropout=id)
    h = jnp.maximum(jnp.dot(x_ref[...], wc1_ref[...],
                            preferred_element_type=jnp.float32) + bc1_ref[...],
                    0.0)
    out_ref[...] = jnp.dot(h, wc2_ref[...],
                           preferred_element_type=jnp.float32) + bc2_ref[...]


# ------------------------------ wrapper --------------------------------------
def cmgpt_classifier_forward(params, x_ids, attention_mask, pool=None,
                             weight_dtype=None):
    block_size, E = params['pos_emb'].shape
    x_ids = x_ids[..., :block_size]
    attention_mask = attention_mask[..., :block_size]
    B, S = x_ids.shape
    n_layer = params['wqkv'].shape[0]
    n_head = params['n_head']
    hid = params['w1'].shape[2]
    num_classes = params['wc2'].shape[1]

    num_tc, vmem_limit, auto_dt = _tpu_tuning()
    if weight_dtype is None:
        weight_dtype = auto_dt

    # embedding gathers + position add (glue, plain JAX)
    tok = jnp.take(params['tok_emb'], x_ids, axis=0)          # [B, S, E]
    pos = params['pos_emb'][:S]                               # [S, E]
    emb = (tok + pos[None, :, :]).astype(jnp.float32)
    mask3 = attention_mask.astype(jnp.float32)[:, None, :]    # [B, 1, S]

    # Big weight matrices may be streamed as bf16 (accumulation stays f32).
    wqkv = params['wqkv'].astype(weight_dtype)                 # [L, E, 3E]
    wproj = params['wproj'].astype(weight_dtype)               # [L, E, E]
    w1 = params['w1'].astype(weight_dtype)                     # [L, E, 4E]
    w2 = params['w2'].astype(weight_dtype)                     # [L, 4E, E]

    # Batch-tile axis ("parallel") matches the number of TensorCores: 2 on v7x,
    # 1 on single-TC v5e/v6e (where splitting would only re-stream the weights).
    nb = num_tc if (B >= num_tc and B % num_tc == 0) else 1
    bb = B // nb

    kernel = functools.partial(transformer_stack_kernel,
                               n_head=n_head, pool=bool(pool))

    def per_layer(shape):
        n = len(shape)
        return pl.BlockSpec((1,) + shape[1:],
                            lambda b, l, n=n: (l,) + (0,) * (n - 1))

    grid_spec = pltpu.PrefetchScalarGridSpec(
        num_scalar_prefetch=0,
        grid=(nb, n_layer),
        in_specs=[
            pl.BlockSpec((bb, S, E), lambda b, l: (b, 0, 0)),   # emb
            pl.BlockSpec((bb, 1, S), lambda b, l: (b, 0, 0)),   # key-pad mask
            pl.BlockSpec((2, E), lambda b, l: (0, 0)),          # ln_f (w, b)
            per_layer((n_layer, E, 3 * E)),                     # fused Wqkv [K,N]
            per_layer((n_layer, E, E)),                         # Wproj    [K,N]
            per_layer((n_layer, 6, E)),                         # packed vectors
            per_layer((n_layer, E, hid)),                       # FFN W1   [K,N]
            per_layer((n_layer, 1, hid)),                       # FFN b1
            per_layer((n_layer, hid, E)),                       # FFN W2   [K,N]
        ],
        out_specs=pl.BlockSpec((bb, 1, E), lambda b, l: (b, 0, 0)),   # pooled
        scratch_shapes=[
            pltpu.VMEM((bb, S, E), jnp.float32),   # resident residual stream
            pltpu.VMEM((bb, S, E), jnp.float32),   # per-layer head outputs
        ],
    )

    cp_kwargs = dict(dimension_semantics=("parallel", "arbitrary"))
    if vmem_limit is not None:
        cp_kwargs['vmem_limit_bytes'] = vmem_limit

    pooled = pl.pallas_call(
        kernel,
        out_shape=jax.ShapeDtypeStruct((B, 1, E), jnp.float32),
        grid_spec=grid_spec,
        compiler_params=pltpu.CompilerParams(**cp_kwargs),
    )(emb, mask3, params['lnf'], wqkv, wproj, params['vecs'],
      w1, params['b1'], w2)

    x_vec = pooled[:, 0, :]                                    # [B, E]

    # Classifier head: pad rows to 8 sublanes and classes to 128 lanes so the
    # output store is dense; slice the real logits back out afterwards.
    C = num_classes
    c_pad = ((C + 127) // 128) * 128
    b_pad = ((B + 7) // 8) * 8
    x_vec_p = jnp.pad(x_vec, ((0, b_pad - B), (0, 0)))
    wc2_p = jnp.pad(params['wc2'], ((0, 0), (0, c_pad - C)))
    bc2_p = jnp.pad(params['bc2'], ((0, 0), (0, c_pad - C)))

    vmem = pl.BlockSpec(memory_space=pltpu.MemorySpace.VMEM)
    logits_p = pl.pallas_call(
        classifier_head_kernel,
        out_shape=jax.ShapeDtypeStruct((b_pad, c_pad), jnp.float32),
        in_specs=[vmem] * 5,
        out_specs=vmem,
    )(x_vec_p, params['wc1'], params['bc1'], wc2_p, bc2_p)
    return logits_p[:B, :C]


# -------------------------- parameter init -----------------------------------
def init_params(key, vocab_size, embed_dim, block_size, n_layer, n_head,
                num_classes):
    """All Linear weights are stored pre-transposed as [in, out]."""
    E = embed_dim
    hs = E // n_head
    hid = 4 * E
    n_keys = 4 + n_layer * (3 * n_head + 3)
    keys = iter(jax.random.split(key, n_keys))
    nk = lambda: next(keys)

    p = {'n_head': n_head}
    p['tok_emb'] = _xavier_uniform(nk(), (vocab_size, E))
    p['pos_emb'] = _xavier_uniform(nk(), (block_size, E))

    ones = jnp.ones((E,), jnp.float32)
    zeros = jnp.zeros((E,), jnp.float32)
    wqkv, wproj, vecs, w1, b1, w2 = [], [], [], [], [], []
    for _ in range(n_layer):
        wq = jnp.concatenate([_xavier_uniform(nk(), (E, hs))
                              for _ in range(n_head)], axis=1)   # [E, E]
        wk = jnp.concatenate([_xavier_uniform(nk(), (E, hs))
                              for _ in range(n_head)], axis=1)
        wv = jnp.concatenate([_xavier_uniform(nk(), (E, hs))
                              for _ in range(n_head)], axis=1)
        wqkv.append(jnp.concatenate([wq, wk, wv], axis=1))       # [E, 3E]
        wproj.append(_xavier_uniform(nk(), (E, E)))
        # packed rows: ln1_w, ln1_b, proj bias, ln2_w, ln2_b, ffn b2
        vecs.append(jnp.stack([ones, zeros, zeros, ones, zeros, zeros], 0))
        w1.append(_xavier_uniform(nk(), (E, hid)))
        b1.append(jnp.zeros((1, hid), jnp.float32))
        w2.append(_xavier_uniform(nk(), (hid, E)))

    p['wqkv'] = jnp.stack(wqkv, 0)      # [L, E, 3E]
    p['wproj'] = jnp.stack(wproj, 0)    # [L, E, E]
    p['vecs'] = jnp.stack(vecs, 0)      # [L, 6, E]
    p['w1'] = jnp.stack(w1, 0)          # [L, E, 4E]
    p['b1'] = jnp.stack(b1, 0)          # [L, 1, 4E]
    p['w2'] = jnp.stack(w2, 0)          # [L, 4E, E]
    p['lnf'] = jnp.stack([ones, zeros], 0)                       # [2, E]

    p['wc1'] = _xavier_uniform(nk(), (E, hid))                   # [E, 4E]
    p['bc1'] = jnp.zeros((1, hid), jnp.float32)
    p['wc2'] = _xavier_uniform(nk(), (hid, num_classes))         # [4E, C]
    p['bc2'] = jnp.zeros((1, num_classes), jnp.float32)
    return p


# ------------------------- pure-JAX reference ---------------------------------
def reference_forward(params, x_ids, attention_mask, pool=None):
    block_size, E = params['pos_emb'].shape
    x_ids = x_ids[..., :block_size]
    attention_mask = attention_mask[..., :block_size]
    B, S = x_ids.shape
    n_layer = params['wqkv'].shape[0]
    H = params['n_head']
    hs = E // H

    x = params['tok_emb'][x_ids] + params['pos_emb'][:S][None]
    key_is_pad = (attention_mask.astype(jnp.float32) == 0.0)[:, None, :]
    for l in range(n_layer):
        v6 = params['vecs'][l]
        xn = _layernorm(x, v6[0], v6[1])
        qkv = xn @ params['wqkv'][l]                       # [B, S, 3E]
        q, k, v = qkv[..., :E], qkv[..., E:2 * E], qkv[..., 2 * E:]
        outs = []
        for h in range(H):
            sl = slice(h * hs, (h + 1) * hs)
            wei = jnp.einsum('bqd,bkd->bqk', q[..., sl], k[..., sl]) \
                * float(E) ** -0.5
            wei = jnp.where(key_is_pad, -1e30, wei)
            wei = jax.nn.softmax(wei, axis=-1)
            outs.append(jnp.einsum('bqk,bkd->bqd', wei, v[..., sl]))
        x = x + jnp.concatenate(outs, -1) @ params['wproj'][l] + v6[2]
        xn2 = _layernorm(x, v6[3], v6[4])
        hh = jax.nn.relu(xn2 @ params['w1'][l] + params['b1'][l])
        x = x + hh @ params['w2'][l] + v6[5]
    x = _layernorm(x, params['lnf'][0], params['lnf'][1])
    xv = jnp.mean(x, axis=1) if pool else x[:, -1, :]
    hc = jax.nn.relu(xv @ params['wc1'] + params['bc1'])
    return hc @ params['wc2'] + params['bc2']


# ------------------------------- main -----------------------------------------
if __name__ == "__main__":
    vocab_size, embed_dim, block_size = 64, 32, 16
    n_layer, n_head, num_classes = 2, 4, 5
    B, S = 2, 8

    key = jax.random.PRNGKey(0)
    kp, kx = jax.random.split(key)
    params = init_params(kp, vocab_size, embed_dim, block_size,
                         n_layer, n_head, num_classes)

    x_ids = jax.random.randint(kx, (B, S), 0, vocab_size, dtype=jnp.int32)
    attention_mask = jnp.array([[1, 1, 1, 1, 1, 1, 0, 0],
                                [1, 1, 1, 1, 1, 1, 1, 1]], dtype=jnp.int32)

    # f32 weight path (last-token pooling): checked against the pure-JAX
    # reference.  Tolerance 1e-3 leaves margin for the EUP approx-reciprocal +
    # Newton softmax normalization and the scale-folded-into-q reassociation.
    logits = jax.block_until_ready(
        cmgpt_classifier_forward(params, x_ids, attention_mask,
                                 weight_dtype=jnp.float32))
    ref = jax.block_until_ready(
        reference_forward(params, x_ids, attention_mask))
    np.testing.assert_allclose(np.asarray(logits), np.asarray(ref),
                               rtol=1e-3, atol=1e-3)

    # pool=True path (in-kernel mean pooling).
    logits_pool = jax.block_until_ready(
        cmgpt_classifier_forward(params, x_ids, attention_mask, pool=True,
                                 weight_dtype=jnp.float32))
    ref_pool = jax.block_until_ready(
        reference_forward(params, x_ids, attention_mask, pool=True))
    np.testing.assert_allclose(np.asarray(logits_pool), np.asarray(ref_pool),
                               rtol=1e-3, atol=1e-3)

    # bf16 weight + attention-matmul streaming path (perf mode): verify it runs
    # and stays reasonably close to the f32 reference.
    logits_bf16 = jax.block_until_ready(
        cmgpt_classifier_forward(params, x_ids, attention_mask,
                                 weight_dtype=jnp.bfloat16))
    np.testing.assert_allclose(np.asarray(logits_bf16), np.asarray(ref),
                               rtol=2e-1, atol=2e-1)

    print("KERNEL_OK")
</pallas_src>

<mosaic_0001>
module attributes {stable_mosaic.version = 11 : i64} {
  func.func @transformer_stack_kernel(%arg0: i32, %arg1: i32, %arg2: memref<2x8x32xf32, #tpu.memory_space<vmem>>, %arg3: memref<2x1x8xf32, #tpu.memory_space<vmem>>, %arg4: memref<2x32xf32, #tpu.memory_space<vmem>>, %arg5: memref<1x32x96xf32, #tpu.memory_space<vmem>>, %arg6: memref<1x32x32xf32, #tpu.memory_space<vmem>>, %arg7: memref<1x6x32xf32, #tpu.memory_space<vmem>>, %arg8: memref<1x32x128xf32, #tpu.memory_space<vmem>>, %arg9: memref<1x1x128xf32, #tpu.memory_space<vmem>>, %arg10: memref<1x128x32xf32, #tpu.memory_space<vmem>>, %arg11: memref<2x1x32xf32, #tpu.memory_space<vmem>>, %arg12: memref<2x8x32xf32, #tpu.memory_space<vmem>>, %arg13: memref<2x8x32xf32, #tpu.memory_space<vmem>>) attributes {dimension_semantics = [#tpu.dimension_semantics<parallel>, #tpu.dimension_semantics<arbitrary>], iteration_bounds = array<i64: 1, 2>, scalar_prefetch = 0 : i64, scratch_operands = 2 : i64, tpu.core_type = #tpu.core_type<tc>, window_params = [{transform_indices = @transform_0, window_bounds = array<i64: 2, 8, 32>}, {transform_indices = @transform_1, window_bounds = array<i64: 2, 1, 8>}, {pipeline_mode = #tpu.pipeline_mode<synchronous>, transform_indices = @transform_2, window_bounds = array<i64: 2, 32>}, {transform_indices = @transform_3, window_bounds = array<i64: 1, 32, 96>}, {transform_indices = @transform_4, window_bounds = array<i64: 1, 32, 32>}, {transform_indices = @transform_5, window_bounds = array<i64: 1, 6, 32>}, {transform_indices = @transform_6, window_bounds = array<i64: 1, 32, 128>}, {transform_indices = @transform_7, window_bounds = array<i64: 1, 1, 128>}, {transform_indices = @transform_8, window_bounds = array<i64: 1, 128, 32>}, {transform_indices = @transform_9, window_bounds = array<i64: 2, 1, 32>}]} {
    %c0_i32 = arith.constant 0 : i32
    %0 = arith.cmpi eq, %arg1, %c0_i32 : i32
    %1 = arith.extui %0 : i1 to i32
    %c0_i32_0 = arith.constant 0 : i32
    %2 = arith.cmpi ne, %1, %c0_i32_0 : i32
    scf.if %2 {
      %c0_81 = arith.constant 0 : index
      %c0_82 = arith.constant 0 : index
      %c0_83 = arith.constant 0 : index
      %216 = vector.load %arg2[%c0_81, %c0_82, %c0_83] : memref<2x8x32xf32, #tpu.memory_space<vmem>>, vector<2x8x32xf32>
      %c0_84 = arith.constant 0 : index
      %c0_85 = arith.constant 0 : index
      %c0_86 = arith.constant 0 : index
      %217 = vector.load %arg12[%c0_84, %c0_85, %c0_86] : memref<2x8x32xf32, #tpu.memory_space<vmem>>, vector<2x8x32xf32>
      tpu.vector_store %arg12[%c0_84, %c0_85, %c0_86], %216 {strides = array<i32>} : memref<2x8x32xf32, #tpu.memory_space<vmem>>, vector<2x8x32xf32>,
    } else {
    }
    %c0 = arith.constant 0 : index
    %c0_1 = arith.constant 0 : index
    %c0_2 = arith.constant 0 : index
    %3 = vector.load %arg12[%c0, %c0_1, %c0_2] : memref<2x8x32xf32, #tpu.memory_space<vmem>>, vector<2x8x32xf32>
    %c0_3 = arith.constant 0 : index
    %c0_4 = arith.constant 0 : index
    %c0_5 = arith.constant 0 : index
    %4 = vector.load %arg7[%c0_3, %c0_4, %c0_5] : memref<1x6x32xf32, #tpu.memory_space<vmem>>, vector<1x6x32xf32>
    %5 = vector.shape_cast %4 : vector<1x6x32xf32> to vector<6x32xf32>
    %6 = vector.extract_strided_slice %5 {offsets = [0, 0], sizes = [1, 32], strides = [1, 1]} : vector<6x32xf32> to vector<1x32xf32>
    %7 = vector.shape_cast %6 : vector<1x32xf32> to vector<32xf32>
    %8 = vector.extract_strided_slice %5 {offsets = [1, 0], sizes = [1, 32], strides = [1, 1]} : vector<6x32xf32> to vector<1x32xf32>
    %9 = vector.shape_cast %8 : vector<1x32xf32> to vector<32xf32>
    %10 = vector.extract_strided_slice %5 {offsets = [2, 0], sizes = [1, 32], strides = [1, 1]} : vector<6x32xf32> to vector<1x32xf32>
    %11 = vector.shape_cast %10 : vector<1x32xf32> to vector<32xf32>
    %12 = vector.extract_strided_slice %5 {offsets = [3, 0], sizes = [1, 32], strides = [1, 1]} : vector<6x32xf32> to vector<1x32xf32>
    %13 = vector.shape_cast %12 : vector<1x32xf32> to vector<32xf32>
    %14 = vector.extract_strided_slice %5 {offsets = [4, 0], sizes = [1, 32], strides = [1, 1]} : vector<6x32xf32> to vector<1x32xf32>
    %15 = vector.shape_cast %14 : vector<1x32xf32> to vector<32xf32>
    %16 = vector.extract_strided_slice %5 {offsets = [5, 0], sizes = [1, 32], strides = [1, 1]} : vector<6x32xf32> to vector<1x32xf32>
    %17 = vector.shape_cast %16 : vector<1x32xf32> to vector<32xf32>
    %c0_6 = arith.constant 0 : index
    %c0_7 = arith.constant 0 : index
    %c0_8 = arith.constant 0 : index
    %18 = vector.load %arg5[%c0_6, %c0_7, %c0_8] : memref<1x32x96xf32, #tpu.memory_space<vmem>>, vector<1x32x96xf32>
    %19 = vector.shape_cast %18 : vector<1x32x96xf32> to vector<32x96xf32>
    %c0_9 = arith.constant 0 : index
    %c0_10 = arith.constant 0 : index
    %c0_11 = arith.constant 0 : index
    %20 = vector.load %arg6[%c0_9, %c0_10, %c0_11] : memref<1x32x32xf32, #tpu.memory_space<vmem>>, vector<1x32x32xf32>
    %21 = vector.shape_cast %20 : vector<1x32x32xf32> to vector<32x32xf32>
    %c0_12 = arith.constant 0 : index
    %c0_13 = arith.constant 0 : index
    %c0_14 = arith.constant 0 : index
    %22 = vector.load %arg8[%c0_12, %c0_13, %c0_14] : memref<1x32x128xf32, #tpu.memory_space<vmem>>, vector<1x32x128xf32>
    %23 = vector.shape_cast %22 : vector<1x32x128xf32> to vector<32x128xf32>
    %c0_15 = arith.constant 0 : index
    %c0_16 = arith.constant 0 : index
    %c0_17 = arith.constant 0 : index
    %24 = vector.load %arg9[%c0_15, %c0_16, %c0_17] : memref<1x1x128xf32, #tpu.memory_space<vmem>>, vector<1x1x128xf32>
    %25 = vector.shape_cast %24 : vector<1x1x128xf32> to vector<1x128xf32>
    %c0_18 = arith.constant 0 : index
    %c0_19 = arith.constant 0 : index
    %c0_20 = arith.constant 0 : index
    %26 = vector.load %arg10[%c0_18, %c0_19, %c0_20] : memref<1x128x32xf32, #tpu.memory_space<vmem>>, vector<1x128x32xf32>
    %27 = vector.shape_cast %26 : vector<1x128x32xf32> to vector<128x32xf32>
    %c0_21 = arith.constant 0 : index
    %c0_22 = arith.constant 0 : index
    %c0_23 = arith.constant 0 : index
    %28 = vector.load %arg3[%c0_21, %c0_22, %c0_23] : memref<2x1x8xf32, #tpu.memory_space<vmem>>, vector<2x1x8xf32>
    %cst = arith.constant 0.000000e+00 : f32
    %29 = vector.broadcast %cst : f32 to vector<2x1x8xf32>
    %30 = arith.cmpf oeq, %28, %29 : vector<2x1x8xf32>
    %cst_24 = arith.constant -1.000000e+30 : f32
    %cst_25 = arith.constant 0.000000e+00 : f32
    %31 = vector.broadcast %cst_24 : f32 to vector<2x1x8xf32>
    %32 = vector.broadcast %cst_25 : f32 to vector<2x1x8xf32>
    %33 = arith.select %30, %31, %32 : vector<2x1x8xi1>, vector<2x1x8xf32>
    %cst_26 = arith.constant dense<0.000000e+00> : vector<2x8xf32>
    %34 = vector.multi_reduction <add>, %3, %cst_26 [2] : vector<2x8x32xf32> to vector<2x8xf32>
    %35 = vector.shape_cast %34 : vector<2x8xf32> to vector<2x8x1xf32>
    %cst_27 = arith.constant 3.200000e+01 : f32
    %36 = vector.broadcast %cst_27 : f32 to vector<2x8x1xf32>
    %37 = arith.divf %35, %36 : vector<2x8x1xf32>
    %38 = vector.broadcast %37 : vector<2x8x1xf32> to vector<2x8x32xf32>
    %39 = arith.subf %3, %38 : vector<2x8x32xf32>
    %40 = arith.mulf %39, %39 : vector<2x8x32xf32>
    %cst_28 = arith.constant dense<0.000000e+00> : vector<2x8xf32>
    %41 = vector.multi_reduction <add>, %40, %cst_28 [2] : vector<2x8x32xf32> to vector<2x8xf32>
    %42 = vector.shape_cast %41 : vector<2x8xf32> to vector<2x8x1xf32>
    %cst_29 = arith.constant 3.200000e+01 : f32
    %43 = vector.broadcast %cst_29 : f32 to vector<2x8x1xf32>
    %44 = arith.divf %42, %43 : vector<2x8x1xf32>
    %45 = vector.broadcast %37 : vector<2x8x1xf32> to vector<2x8x32xf32>
    %46 = arith.subf %3, %45 : vector<2x8x32xf32>
    %cst_30 = arith.constant 9.99999974E-6 : f32
    %47 = vector.broadcast %cst_30 : f32 to vector<2x8x1xf32>
    %48 = arith.addf %44, %47 : vector<2x8x1xf32>
    %49 = math.rsqrt %48 : vector<2x8x1xf32>
    %50 = vector.broadcast %49 : vector<2x8x1xf32> to vector<2x8x32xf32>
    %51 = arith.mulf %46, %50 : vector<2x8x32xf32>
    %52 = vector.shape_cast %7 : vector<32xf32> to vector<1x1x32xf32>
    %53 = vector.broadcast %52 : vector<1x1x32xf32> to vector<2x8x32xf32>
    %54 = arith.mulf %51, %53 : vector<2x8x32xf32>
    %55 = vector.shape_cast %9 : vector<32xf32> to vector<1x1x32xf32>
    %56 = vector.broadcast %55 : vector<1x1x32xf32> to vector<2x8x32xf32>
    %57 = arith.addf %54, %56 : vector<2x8x32xf32>
    %58 = vector.shape_cast %57 : vector<2x8x32xf32> to vector<16x32xf32>
    %cst_31 = arith.constant dense<0.000000e+00> : vector<16x96xf32>
    %59 = tpu.matmul %58, %19, %cst_31 {dimension_numbers = #tpu.dot_dimension_numbers<[1], [0], [0], [1], [0, 0, 1, 1], [], []>} : vector<16x32xf32>, vector<32x96xf32>, vector<16x96xf32> -> vector<16x96xf32>
    %60 = vector.extract_strided_slice %59 {offsets = [0, 0], sizes = [16, 8], strides = [1, 1]} : vector<16x96xf32> to vector<16x8xf32>
    %cst_32 = arith.constant 0.176776692 : f32
    %61 = vector.broadcast %cst_32 : f32 to vector<16x8xf32>
    %62 = arith.mulf %60, %61 : vector<16x8xf32>
    %63 = vector.shape_cast %62 : vector<16x8xf32> to vector<2x8x8xf32>
    %64 = vector.extract_strided_slice %59 {offsets = [0, 32], sizes = [16, 8], strides = [1, 1]} : vector<16x96xf32> to vector<16x8xf32>
    %65 = vector.shape_cast %64 : vector<16x8xf32> to vector<2x8x8xf32>
    %66 = vector.extract_strided_slice %59 {offsets = [0, 64], sizes = [16, 8], strides = [1, 1]} : vector<16x96xf32> to vector<16x8xf32>
    %67 = vector.shape_cast %66 : vector<16x8xf32> to vector<2x8x8xf32>
    "tpu.trace_start"() <{level = 10 : i32, message = "bqd,bkd->bqk"}> : () -> ()
    %cst_33 = arith.constant dense<0.000000e+00> : vector<2x8x8xf32>
    %68 = tpu.matmul %63, %65, %cst_33 {dimension_numbers = #tpu.dot_dimension_numbers<[2], [2], [1], [1], [0, 0, 0, 1, 1, 1], [0], [0]>} : vector<2x8x8xf32>, vector<2x8x8xf32>, vector<2x8x8xf32> -> vector<2x8x8xf32>
    "tpu.trace_stop"() : () -> ()
    %69 = vector.broadcast %33 : vector<2x1x8xf32> to vector<2x8x8xf32>
    %70 = arith.addf %68, %69 : vector<2x8x8xf32>
    %cst_34 = arith.constant dense<0xFF800000> : vector<2x8xf32>
    %71 = vector.multi_reduction <maximumf>, %70, %cst_34 [2] : vector<2x8x8xf32> to vector<2x8xf32>
    %72 = vector.shape_cast %71 : vector<2x8xf32> to vector<2x8x1xf32>
    %73 = vector.broadcast %72 : vector<2x8x1xf32> to vector<2x8x8xf32>
    %74 = arith.subf %70, %73 : vector<2x8x8xf32>
    %75 = math.exp %74 : vector<2x8x8xf32>
    %cst_35 = arith.constant dense<0.000000e+00> : vector<2x8xf32>
    %76 = vector.multi_reduction <add>, %75, %cst_35 [2] : vector<2x8x8xf32> to vector<2x8xf32>
    %77 = vector.shape_cast %76 : vector<2x8xf32> to vector<2x8x1xf32>
    %78 = tpu.reciprocal %77 {approx = true} : vector<2x8x1xf32> -> vector<2x8x1xf32>
    %79 = arith.mulf %77, %78 : vector<2x8x1xf32>
    %cst_36 = arith.constant 2.000000e+00 : f32
    %80 = vector.broadcast %cst_36 : f32 to vector<2x8x1xf32>
    %81 = arith.subf %80, %79 : vector<2x8x1xf32>
    %82 = arith.mulf %78, %81 : vector<2x8x1xf32>
    %83 = vector.broadcast %82 : vector<2x8x1xf32> to vector<2x8x8xf32>
    %84 = arith.mulf %75, %83 : vector<2x8x8xf32>
    "tpu.trace_start"() <{level = 10 : i32, message = "bqk,bkd->bqd"}> : () -> ()
    %cst_37 = arith.constant dense<0.000000e+00> : vector<2x8x8xf32>
    %85 = tpu.matmul %84, %67, %cst_37 {dimension_numbers = #tpu.dot_dimension_numbers<[2], [1], [1], [2], [0, 0, 0, 1, 1, 2], [0], [0]>} : vector<2x8x8xf32>, vector<2x8x8xf32>, vector<2x8x8xf32> -> vector<2x8x8xf32>
    "tpu.trace_stop"() : () -> ()
    %c0_38 = arith.constant 0 : index
    %c0_39 = arith.constant 0 : index
    %c0_40 = arith.constant 0 : index
    %86 = vector.load %arg13[%c0_38, %c0_39, %c0_40] : memref<2x8x32xf32, #tpu.memory_space<vmem>>, vector<2x8x8xf32>
    tpu.vector_store %arg13[%c0_38, %c0_39, %c0_40], %85 {strides = array<i32>} : memref<2x8x32xf32, #tpu.memory_space<vmem>>, vector<2x8x8xf32>,
    %87 = vector.extract_strided_slice %59 {offsets = [0, 8], sizes = [16, 8], strides = [1, 1]} : vector<16x96xf32> to vector<16x8xf32>
    %cst_41 = arith.constant 0.176776692 : f32
    %88 = vector.broadcast %cst_41 : f32 to vector<16x8xf32>
    %89 = arith.mulf %87, %88 : vector<16x8xf32>
    %90 = vector.shape_cast %89 : vector<16x8xf32> to vector<2x8x8xf32>
    %91 = vector.extract_strided_slice %59 {offsets = [0, 40], sizes = [16, 8], strides = [1, 1]} : vector<16x96xf32> to vector<16x8xf32>
    %92 = vector.shape_cast %91 : vector<16x8xf32> to vector<2x8x8xf32>
    %93 = vector.extract_strided_slice %59 {offsets = [0, 72], sizes = [16, 8], strides = [1, 1]} : vector<16x96xf32> to vector<16x8xf32>
    %94 = vector.shape_cast %93 : vector<16x8xf32> to vector<2x8x8xf32>
    "tpu.trace_start"() <{level = 10 : i32, message = "bqd,bkd->bqk"}> : () -> ()
    %cst_42 = arith.constant dense<0.000000e+00> : vector<2x8x8xf32>
    %95 = tpu.matmul %90, %92, %cst_42 {dimension_numbers = #tpu.dot_dimension_numbers<[2], [2], [1], [1], [0, 0, 0, 1, 1, 1], [0], [0]>} : vector<2x8x8xf32>, vector<2x8x8xf32>, vector<2x8x8xf32> -> vector<2x8x8xf32>
    "tpu.trace_stop"() : () -> ()
    %96 = vector.broadcast %33 : vector<2x1x8xf32> to vector<2x8x8xf32>
    %97 = arith.addf %95, %96 : vector<2x8x8xf32>
    %cst_43 = arith.constant dense<0xFF800000> : vector<2x8xf32>
    %98 = vector.multi_reduction <maximumf>, %97, %cst_43 [2] : vector<2x8x8xf32> to vector<2x8xf32>
    %99 = vector.shape_cast %98 : vector<2x8xf32> to vector<2x8x1xf32>
    %100 = vector.broadcast %99 : vector<2x8x1xf32> to vector<2x8x8xf32>
    %101 = arith.subf %97, %100 : vector<2x8x8xf32>
    %102 = math.exp %101 : vector<2x8x8xf32>
    %cst_44 = arith.constant dense<0.000000e+00> : vector<2x8xf32>
    %103 = vector.multi_reduction <add>, %102, %cst_44 [2] : vector<2x8x8xf32> to vector<2x8xf32>
    %104 = vector.shape_cast %103 : vector<2x8xf32> to vector<2x8x1xf32>
    %105 = tpu.reciprocal %104 {approx = true} : vector<2x8x1xf32> -> vector<2x8x1xf32>
    %106 = arith.mulf %104, %105 : vector<2x8x1xf32>
    %cst_45 = arith.constant 2.000000e+00 : f32
    %107 = vector.broadcast %cst_45 : f32 to vector<2x8x1xf32>
    %108 = arith.subf %107, %106 : vector<2x8x1xf32>
    %109 = arith.mulf %105, %108 : vector<2x8x1xf32>
    %110 = vector.broadcast %109 : vector<2x8x1xf32> to vector<2x8x8xf32>
    %111 = arith.mulf %102, %110 : vector<2x8x8xf32>
    "tpu.trace_start"() <{level = 10 : i32, message = "bqk,bkd->bqd"}> : () -> ()
    %cst_46 = arith.constant dense<0.000000e+00> : vector<2x8x8xf32>
    %112 = tpu.matmul %111, %94, %cst_46 {dimension_numbers = #tpu.dot_dimension_numbers<[2], [1], [1], [2], [0, 0, 0, 1, 1, 2], [0], [0]>} : vector<2x8x8xf32>, vector<2x8x8xf32>, vector<2x8x8xf32> -> vector<2x8x8xf32>
    "tpu.trace_stop"() : () -> ()
    %c0_47 = arith.constant 0 : index
    %c0_48 = arith.constant 0 : index
    %c8 = arith.constant 8 : index
    %113 = vector.load %arg13[%c0_47, %c0_48, %c8] : memref<2x8x32xf32, #tpu.memory_space<vmem>>, vector<2x8x8xf32>
    tpu.vector_store %arg13[%c0_47, %c0_48, %c8], %112 {strides = array<i32>} : memref<2x8x32xf32, #tpu.memory_space<vmem>>, vector<2x8x8xf32>,
    %114 = vector.extract_strided_slice %59 {offsets = [0, 16], sizes = [16, 8], strides = [1, 1]} : vector<16x96xf32> to vector<16x8xf32>
    %cst_49 = arith.constant 0.176776692 : f32
    %115 = vector.broadcast %cst_49 : f32 to vector<16x8xf32>
    %116 = arith.mulf %114, %115 : vector<16x8xf32>
    %117 = vector.shape_cast %116 : vector<16x8xf32> to vector<2x8x8xf32>
    %118 = vector.extract_strided_slice %59 {offsets = [0, 48], sizes = [16, 8], strides = [1, 1]} : vector<16x96xf32> to vector<16x8xf32>
    %119 = vector.shape_cast %118 : vector<16x8xf32> to vector<2x8x8xf32>
    %120 = vector.extract_strided_slice %59 {offsets = [0, 80], sizes = [16, 8], strides = [1, 1]} : vector<16x96xf32> to vector<16x8xf32>
    %121 = vector.shape_cast %120 : vector<16x8xf32> to vector<2x8x8xf32>
    "tpu.trace_start"() <{level = 10 : i32, message = "bqd,bkd->bqk"}> : () -> ()
    %cst_50 = arith.constant dense<0.000000e+00> : vector<2x8x8xf32>
    %122 = tpu.matmul %117, %119, %cst_50 {dimension_numbers = #tpu.dot_dimension_numbers<[2], [2], [1], [1], [0, 0, 0, 1, 1, 1], [0], [0]>} : vector<2x8x8xf32>, vector<2x8x8xf32>, vector<2x8x8xf32> -> vector<2x8x8xf32>
    "tpu.trace_stop"() : () -> ()
    %123 = vector.broadcast %33 : vector<2x1x8xf32> to vector<2x8x8xf32>
    %124 = arith.addf %122, %123 : vector<2x8x8xf32>
    %cst_51 = arith.constant dense<0xFF800000> : vector<2x8xf32>
    %125 = vector.multi_reduction <maximumf>, %124, %cst_51 [2] : vector<2x8x8xf32> to vector<2x8xf32>
    %126 = vector.shape_cast %125 : vector<2x8xf32> to vector<2x8x1xf32>
    %127 = vector.broadcast %126 : vector<2x8x1xf32> to vector<2x8x8xf32>
    %128 = arith.subf %124, %127 : vector<2x8x8xf32>
    %129 = math.exp %128 : vector<2x8x8xf32>
    %cst_52 = arith.constant dense<0.000000e+00> : vector<2x8xf32>
    %130 = vector.multi_reduction <add>, %129, %cst_52 [2] : vector<2x8x8xf32> to vector<2x8xf32>
    %131 = vector.shape_cast %130 : vector<2x8xf32> to vector<2x8x1xf32>
    %132 = tpu.reciprocal %131 {approx = true} : vector<2x8x1xf32> -> vector<2x8x1xf32>
    %133 = arith.mulf %131, %132 : vector<2x8x1xf32>
    %cst_53 = arith.constant 2.000000e+00 : f32
    %134 = vector.broadcast %cst_53 : f32 to vector<2x8x1xf32>
    %135 = arith.subf %134, %133 : vector<2x8x1xf32>
    %136 = arith.mulf %132, %135 : vector<2x8x1xf32>
    %137 = vector.broadcast %136 : vector<2x8x1xf32> to vector<2x8x8xf32>
    %138 = arith.mulf %129, %137 : vector<2x8x8xf32>
    "tpu.trace_start"() <{level = 10 : i32, message = "bqk,bkd->bqd"}> : () -> ()
    %cst_54 = arith.constant dense<0.000000e+00> : vector<2x8x8xf32>
    %139 = tpu.matmul %138, %121, %cst_54 {dimension_numbers = #tpu.dot_dimension_numbers<[2], [1], [1], [2], [0, 0, 0, 1, 1, 2], [0], [0]>} : vector<2x8x8xf32>, vector<2x8x8xf32>, vector<2x8x8xf32> -> vector<2x8x8xf32>
    "tpu.trace_stop"() : () -> ()
    %c0_55 = arith.constant 0 : index
    %c0_56 = arith.constant 0 : index
    %c16 = arith.constant 16 : index
    %140 = vector.load %arg13[%c0_55, %c0_56, %c16] : memref<2x8x32xf32, #tpu.memory_space<vmem>>, vector<2x8x8xf32>
    tpu.vector_store %arg13[%c0_55, %c0_56, %c16], %139 {strides = array<i32>} : memref<2x8x32xf32, #tpu.memory_space<vmem>>, vector<2x8x8xf32>,
    %141 = vector.extract_strided_slice %59 {offsets = [0, 24], sizes = [16, 8], strides = [1, 1]} : vector<16x96xf32> to vector<16x8xf32>
    %cst_57 = arith.constant 0.176776692 : f32
    %142 = vector.broadcast %cst_57 : f32 to vector<16x8xf32>
    %143 = arith.mulf %141, %142 : vector<16x8xf32>
    %144 = vector.shape_cast %143 : vector<16x8xf32> to vector<2x8x8xf32>
    %145 = vector.extract_strided_slice %59 {offsets = [0, 56], sizes = [16, 8], strides = [1, 1]} : vector<16x96xf32> to vector<16x8xf32>
    %146 = vector.shape_cast %145 : vector<16x8xf32> to vector<2x8x8xf32>
    %147 = vector.extract_strided_slice %59 {offsets = [0, 88], sizes = [16, 8], strides = [1, 1]} : vector<16x96xf32> to vector<16x8xf32>
    %148 = vector.shape_cast %147 : vector<16x8xf32> to vector<2x8x8xf32>
    "tpu.trace_start"() <{level = 10 : i32, message = "bqd,bkd->bqk"}> : () -> ()
    %cst_58 = arith.constant dense<0.000000e+00> : vector<2x8x8xf32>
    %149 = tpu.matmul %144, %146, %cst_58 {dimension_numbers = #tpu.dot_dimension_numbers<[2], [2], [1], [1], [0, 0, 0, 1, 1, 1], [0], [0]>} : vector<2x8x8xf32>, vector<2x8x8xf32>, vector<2x8x8xf32> -> vector<2x8x8xf32>
    "tpu.trace_stop"() : () -> ()
    %150 = vector.broadcast %33 : vector<2x1x8xf32> to vector<2x8x8xf32>
    %151 = arith.addf %149, %150 : vector<2x8x8xf32>
    %cst_59 = arith.constant dense<0xFF800000> : vector<2x8xf32>
    %152 = vector.multi_reduction <maximumf>, %151, %cst_59 [2] : vector<2x8x8xf32> to vector<2x8xf32>
    %153 = vector.shape_cast %152 : vector<2x8xf32> to vector<2x8x1xf32>
    %154 = vector.broadcast %153 : vector<2x8x1xf32> to vector<2x8x8xf32>
    %155 = arith.subf %151, %154 : vector<2x8x8xf32>
    %156 = math.exp %155 : vector<2x8x8xf32>
    %cst_60 = arith.constant dense<0.000000e+00> : vector<2x8xf32>
    %157 = vector.multi_reduction <add>, %156, %cst_60 [2] : vector<2x8x8xf32> to vector<2x8xf32>
    %158 = vector.shape_cast %157 : vector<2x8xf32> to vector<2x8x1xf32>
    %159 = tpu.reciprocal %158 {approx = true} : vector<2x8x1xf32> -> vector<2x8x1xf32>
    %160 = arith.mulf %158, %159 : vector<2x8x1xf32>
    %cst_61 = arith.constant 2.000000e+00 : f32
    %161 = vector.broadcast %cst_61 : f32 to vector<2x8x1xf32>
    %162 = arith.subf %161, %160 : vector<2x8x1xf32>
    %163 = arith.mulf %159, %162 : vector<2x8x1xf32>
    %164 = vector.broadcast %163 : vector<2x8x1xf32> to vector<2x8x8xf32>
    %165 = arith.mulf %156, %164 : vector<2x8x8xf32>
    "tpu.trace_start"() <{level = 10 : i32, message = "bqk,bkd->bqd"}> : () -> ()
    %cst_62 = arith.constant dense<0.000000e+00> : vector<2x8x8xf32>
    %166 = tpu.matmul %165, %148, %cst_62 {dimension_numbers = #tpu.dot_dimension_numbers<[2], [1], [1], [2], [0, 0, 0, 1, 1, 2], [0], [0]>} : vector<2x8x8xf32>, vector<2x8x8xf32>, vector<2x8x8xf32> -> vector<2x8x8xf32>
    "tpu.trace_stop"() : () -> ()
    %c0_63 = arith.constant 0 : index
    %c0_64 = arith.constant 0 : index
    %c24 = arith.constant 24 : index
    %167 = vector.load %arg13[%c0_63, %c0_64, %c24] : memref<2x8x32xf32, #tpu.memory_space<vmem>>, vector<2x8x8xf32>
    tpu.vector_store %arg13[%c0_63, %c0_64, %c24], %166 {strides = array<i32>} : memref<2x8x32xf32, #tpu.memory_space<vmem>>, vector<2x8x8xf32>,
    %c0_65 = arith.constant 0 : index
    %c0_66 = arith.constant 0 : index
    %c0_67 = arith.constant 0 : index
    %168 = vector.load %arg13[%c0_65, %c0_66, %c0_67] : memref<2x8x32xf32, #tpu.memory_space<vmem>>, vector<2x8x32xf32>
    %169 = vector.shape_cast %168 : vector<2x8x32xf32> to vector<16x32xf32>
    %cst_68 = arith.constant dense<0.000000e+00> : vector<16x32xf32>
    %170 = tpu.matmul %169, %21, %cst_68 {dimension_numbers = #tpu.dot_dimension_numbers<[1], [0], [0], [1], [0, 0, 1, 1], [], []>} : vector<16x32xf32>, vector<32x32xf32>, vector<16x32xf32> -> vector<16x32xf32>
    %171 = vector.shape_cast %11 : vector<32xf32> to vector<1x32xf32>
    %172 = vector.broadcast %171 : vector<1x32xf32> to vector<16x32xf32>
    %173 = arith.addf %170, %172 : vector<16x32xf32>
    %174 = vector.shape_cast %173 : vector<16x32xf32> to vector<2x8x32xf32>
    %175 = arith.addf %3, %174 : vector<2x8x32xf32>
    %cst_69 = arith.constant dense<0.000000e+00> : vector<2x8xf32>
    %176 = vector.multi_reduction <add>, %175, %cst_69 [2] : vector<2x8x32xf32> to vector<2x8xf32>
    %177 = vector.shape_cast %176 : vector<2x8xf32> to vector<2x8x1xf32>
    %cst_70 = arith.constant 3.200000e+01 : f32
    %178 = vector.broadcast %cst_70 : f32 to vector<2x8x1xf32>
    %179 = arith.divf %177, %178 : vector<2x8x1xf32>
    %180 = vector.broadcast %179 : vector<2x8x1xf32> to vector<2x8x32xf32>
    %181 = arith.subf %175, %180 : vector<2x8x32xf32>
    %182 = arith.mulf %181, %181 : vector<2x8x32xf32>
    %cst_71 = arith.constant dense<0.000000e+00> : vector<2x8xf32>
    %183 = vector.multi_reduction <add>, %182, %cst_71 [2] : vector<2x8x32xf32> to vector<2x8xf32>
    %184 = vector.shape_cast %183 : vector<2x8xf32> to vector<2x8x1xf32>
    %cst_72 = arith.constant 3.200000e+01 : f32
    %185 = vector.broadcast %cst_72 : f32 to vector<2x8x1xf32>
    %186 = arith.divf %184, %185 : vector<2x8x1xf32>
    %187 = vector.broadcast %179 : vector<2x8x1xf32> to vector<2x8x32xf32>
    %188 = arith.subf %175, %187 : vector<2x8x32xf32>
    %cst_73 = arith.constant 9.99999974E-6 : f32
    %189 = vector.broadcast %cst_73 : f32 to vector<2x8x1xf32>
    %190 = arith.addf %186, %189 : vector<2x8x1xf32>
    %191 = math.rsqrt %190 : vector<2x8x1xf32>
    %192 = vector.broadcast %191 : vector<2x8x1xf32> to vector<2x8x32xf32>
    %193 = arith.mulf %188, %192 : vector<2x8x32xf32>
    %194 = vector.shape_cast %13 : vector<32xf32> to vector<1x1x32xf32>
    %195 = vector.broadcast %194 : vector<1x1x32xf32> to vector<2x8x32xf32>
    %196 = arith.mulf %193, %195 : vector<2x8x32xf32>
    %197 = vector.shape_cast %15 : vector<32xf32> to vector<1x1x32xf32>
    %198 = vector.broadcast %197 : vector<1x1x32xf32> to vector<2x8x32xf32>
    %199 = arith.addf %196, %198 : vector<2x8x32xf32>
    %200 = vector.shape_cast %199 : vector<2x8x32xf32> to vector<16x32xf32>
    %cst_74 = arith.constant dense<0.000000e+00> : vector<16x128xf32>
    %201 = tpu.matmul %200, %23, %cst_74 {dimension_numbers = #tpu.dot_dimension_numbers<[1], [0], [0], [1], [0, 0, 1, 1], [], []>} : vector<16x32xf32>, vector<32x128xf32>, vector<16x128xf32> -> vector<16x128xf32>
    %202 = vector.broadcast %25 : vector<1x128xf32> to vector<16x128xf32>
    %203 = arith.addf %201, %202 : vector<16x128xf32>
    %cst_75 = arith.constant 0.000000e+00 : f32
    %204 = vector.broadcast %cst_75 : f32 to vector<16x128xf32>
    %205 = arith.maximumf %203, %204 : vector<16x128xf32>
    %cst_76 = arith.constant dense<0.000000e+00> : vector<16x32xf32>
    %206 = tpu.matmul %205, %27, %cst_76 {dimension_numbers = #tpu.dot_dimension_numbers<[1], [0], [0], [1], [0, 0, 1, 1], [], []>} : vector<16x128xf32>, vector<128x32xf32>, vector<16x32xf32> -> vector<16x32xf32>
    %207 = vector.shape_cast %17 : vector<32xf32> to vector<1x32xf32>
    %208 = vector.broadcast %207 : vector<1x32xf32> to vector<16x32xf32>
    %209 = arith.addf %206, %208 : vector<16x32xf32>
    %210 = vector.shape_cast %209 : vector<16x32xf32> to vector<2x8x32xf32>
    %211 = arith.addf %175, %210 : vector<2x8x32xf32>
    %c0_77 = arith.constant 0 : index
    %c0_78 = arith.constant 0 : index
    %c0_79 = arith.constant 0 : index
    %212 = vector.load %arg12[%c0_77, %c0_78, %c0_79] : memref<2x8x32xf32, #tpu.memory_space<vmem>>, vector<2x8x32xf32>
    tpu.vector_store %arg12[%c0_77, %c0_78, %c0_79], %211 {strides = array<i32>} : memref<2x8x32xf32, #tpu.memory_space<vmem>>, vector<2x8x32xf32>,
    %c1_i32 = arith.constant 1 : i32
    %213 = arith.cmpi eq, %arg1, %c1_i32 : i32
    %214 = arith.extui %213 : i1 to i32
    %c0_i32_80 = arith.constant 0 : i32
    %215 = arith.cmpi ne, %214, %c0_i32_80 : i32
    scf.if %215 {
      %c0_81 = arith.constant 0 : index
      %c0_82 = arith.constant 0 : index
      %216 = vector.load %arg4[%c0_81, %c0_82] : memref<2x32xf32, #tpu.memory_space<vmem>>, vector<1x32xf32>
      %217 = vector.shape_cast %216 : vector<1x32xf32> to vector<32xf32>
      %c1 = arith.constant 1 : index
      %c0_83 = arith.constant 0 : index
      %218 = vector.load %arg4[%c1, %c0_83] : memref<2x32xf32, #tpu.memory_space<vmem>>, vector<1x32xf32>
      %219 = vector.shape_cast %218 : vector<1x32xf32> to vector<32xf32>
      %cst_84 = arith.constant dense<0.000000e+00> : vector<2x8xf32>
      %220 = vector.multi_reduction <add>, %211, %cst_84 [2] : vector<2x8x32xf32> to vector<2x8xf32>
      %221 = vector.shape_cast %220 : vector<2x8xf32> to vector<2x8x1xf32>
      %cst_85 = arith.constant 3.200000e+01 : f32
      %222 = vector.broadcast %cst_85 : f32 to vector<2x8x1xf32>
      %223 = arith.divf %221, %222 : vector<2x8x1xf32>
      %224 = vector.broadcast %223 : vector<2x8x1xf32> to vector<2x8x32xf32>
      %225 = arith.subf %211, %224 : vector<2x8x32xf32>
      %226 = arith.mulf %225, %225 : vector<2x8x32xf32>
      %cst_86 = arith.constant dense<0.000000e+00> : vector<2x8xf32>
      %227 = vector.multi_reduction <add>, %226, %cst_86 [2] : vector<2x8x32xf32> to vector<2x8xf32>
      %228 = vector.shape_cast %227 : vector<2x8xf32> to vector<2x8x1xf32>
      %cst_87 = arith.constant 3.200000e+01 : f32
      %229 = vector.broadcast %cst_87 : f32 to vector<2x8x1xf32>
      %230 = arith.divf %228, %229 : vector<2x8x1xf32>
      %231 = vector.broadcast %223 : vector<2x8x1xf32> to vector<2x8x32xf32>
      %232 = arith.subf %211, %231 : vector<2x8x32xf32>
      %cst_88 = arith.constant 9.99999974E-6 : f32
      %233 = vector.broadcast %cst_88 : f32 to vector<2x8x1xf32>
      %234 = arith.addf %230, %233 : vector<2x8x1xf32>
      %235 = math.rsqrt %234 : vector<2x8x1xf32>
      %236 = vector.broadcast %235 : vector<2x8x1xf32> to vector<2x8x32xf32>
      %237 = arith.mulf %232, %236 : vector<2x8x32xf32>
      %238 = vector.shape_cast %217 : vector<32xf32> to vector<1x1x32xf32>
      %239 = vector.broadcast %238 : vector<1x1x32xf32> to vector<2x8x32xf32>
      %240 = arith.mulf %237, %239 : vector<2x8x32xf32>
      %241 = vector.shape_cast %219 : vector<32xf32> to vector<1x1x32xf32>
      %242 = vector.broadcast %241 : vector<1x1x32xf32> to vector<2x8x32xf32>
      %243 = arith.addf %240, %242 : vector<2x8x32xf32>
      %244 = vector.extract_strided_slice %243 {offsets = [0, 7, 0], sizes = [2, 1, 32], strides = [1, 1, 1]} : vector<2x8x32xf32> to vector<2x1x32xf32>
      %c0_89 = arith.constant 0 : index
      %c0_90 = arith.constant 0 : index
      %c0_91 = arith.constant 0 : index
      %245 = vector.load %arg11[%c0_89, %c0_90, %c0_91] : memref<2x1x32xf32, #tpu.memory_space<vmem>>, vector<2x1x32xf32>
      tpu.vector_store %arg11[%c0_89, %c0_90, %c0_91], %244 {strides = array<i32>} : memref<2x1x32xf32, #tpu.memory_space<vmem>>, vector<2x1x32xf32>,
    } else {
    }
    return
  }
  func.func @transform_0(%arg0: i32, %arg1: i32) -> (i32, i32, i32) {
    %c0_i32 = arith.constant 0 : i32
    %c0_i32_0 = arith.constant 0 : i32
    %c0_i32_1 = arith.constant 0 : i32
    return %arg0, %c0_i32, %c0_i32_0 : i32, i32, i32
  }
  func.func @transform_1(%arg0: i32, %arg1: i32) -> (i32, i32, i32) {
    %c0_i32 = arith.constant 0 : i32
    %c0_i32_0 = arith.constant 0 : i32
    %c0_i32_1 = arith.constant 0 : i32
    return %arg0, %c0_i32, %c0_i32_0 : i32, i32, i32
  }
  func.func @transform_2(%arg0: i32, %arg1: i32) -> (i32, i32) {
    %c0_i32 = arith.constant 0 : i32
    %c0_i32_0 = arith.constant 0 : i32
    %c0_i32_1 = arith.constant 0 : i32
    return %c0_i32, %c0_i32_0 : i32, i32
  }
  func.func @transform_3(%arg0: i32, %arg1: i32) -> (i32, i32, i32) {
    %c0_i32 = arith.constant 0 : i32
    %c0_i32_0 = arith.constant 0 : i32
    %c0_i32_1 = arith.constant 0 : i32
    return %arg1, %c0_i32, %c0_i32_0 : i32, i32, i32
  }
  func.func @transform_4(%arg0: i32, %arg1: i32) -> (i32, i32, i32) {
    %c0_i32 = arith.constant 0 : i32
    %c0_i32_0 = arith.constant 0 : i32
    %c0_i32_1 = arith.constant 0 : i32
    return %arg1, %c0_i32, %c0_i32_0 : i32, i32, i32
  }
  func.func @transform_5(%arg0: i32, %arg1: i32) -> (i32, i32, i32) {
    %c0_i32 = arith.constant 0 : i32
    %c0_i32_0 = arith.constant 0 : i32
    %c0_i32_1 = arith.constant 0 : i32
    return %arg1, %c0_i32, %c0_i32_0 : i32, i32, i32
  }
  func.func @transform_6(%arg0: i32, %arg1: i32) -> (i32, i32, i32) {
    %c0_i32 = arith.constant 0 : i32
    %c0_i32_0 = arith.constant 0 : i32
    %c0_i32_1 = arith.constant 0 : i32
    return %arg1, %c0_i32, %c0_i32_0 : i32, i32, i32
  }
  func.func @transform_7(%arg0: i32, %arg1: i32) -> (i32, i32, i32) {
    %c0_i32 = arith.constant 0 : i32
    %c0_i32_0 = arith.constant 0 : i32
    %c0_i32_1 = arith.constant 0 : i32
    return %arg1, %c0_i32, %c0_i32_0 : i32, i32, i32
  }
  func.func @transform_8(%arg0: i32, %arg1: i32) -> (i32, i32, i32) {
    %c0_i32 = arith.constant 0 : i32
    %c0_i32_0 = arith.constant 0 : i32
    %c0_i32_1 = arith.constant 0 : i32
    return %arg1, %c0_i32, %c0_i32_0 : i32, i32, i32
  }
  func.func @transform_9(%arg0: i32, %arg1: i32) -> (i32, i32, i32) {
    %c0_i32 = arith.constant 0 : i32
    %c0_i32_0 = arith.constant 0 : i32
    %c0_i32_1 = arith.constant 0 : i32
    return %arg0, %c0_i32, %c0_i32_0 : i32, i32, i32
  }
}

</mosaic_0001>

<llo_original>
// kernel: tpu_custom_call.1
$region0: #{tpu_custom_call.1}
  #allocation0 [shape = 'u32[]', space=smem, size = 0x4, offset = 0x4, fixed_abs, tag = 'smem constant byte address 0x4 - core index']
  #allocation1 [shape = 'u32[72,128]{1,0:T(1,128)}', space=vmem, size = 0x9000, scoped, tag = 'internal scratch']
  #allocation2 [shape = 'f32[2,8,32]{2,1,0:T(8,128)}', space=vmem, size = 0x2000, scoped, tag = 'scratch operand']
  #allocation3 [shape = 'f32[2,8,32]{2,1,0:T(8,128)}', space=vmem, size = 0x2000, scoped, tag = 'scratch operand']
  %s0 = inlined_call_operand.vmem [shape: f32[2,8,32], index: 0, kind: input, shape index: {}]
  %s1 = inlined_call_operand.vmem [shape: f32[2,1,8], index: 1, kind: input, shape index: {}]
  %s2 = inlined_call_operand.vmem [shape: f32[2,32], index: 2, kind: input, shape index: {}]
  %s3 = inlined_call_operand.vmem [shape: f32[2,32,96], index: 3, kind: input, shape index: {}]
  %s4 = inlined_call_operand.vmem [shape: f32[2,32,32], index: 4, kind: input, shape index: {}]
  %s5 = inlined_call_operand.vmem [shape: f32[2,6,32], index: 5, kind: input, shape index: {}]
  %s6 = inlined_call_operand.vmem [shape: f32[2,32,128], index: 6, kind: input, shape index: {}]
  %s7 = inlined_call_operand.vmem [shape: f32[2,1,128], index: 7, kind: input, shape index: {}]
  %s8 = inlined_call_operand.vmem [shape: f32[2,128,32], index: 8, kind: input, shape index: {}]
  %s9 = inlined_call_operand.hbm [shape: f32[2,1,32], index: 9, kind: output, shape index: {}]
  %s10 = sld [smem:[#allocation0]]
  $region77: #{tpu_custom_call.1} parent=0
    _
  %s12 = ssub.s32 1, %s10
  %s13 = scalar_select 0, %s12, %s10
  $region1: #{tpu_custom_call.1} parent=0
    #allocation4 [shape = 'u8[1024]{0}', space=vmem, size = 0x400, scoped, tag = 'output window, operand 0, single buffered']
    #allocation5 [shape = 's32[2]{0}', space=sflag, size = 0x8, scoped, tag = 'scoped memory for tpu_custom_call.1']
    %14 = vsyncpa [#allocation5], 0
    loop: start=0, step=1, limit=4
    $region2: #{tpu_custom_call.1} parent=1 // loop_pre_header
      _
    $region3: #{tpu_custom_call.1} parent=1 // loop_header
      %s16 = sphi 0, %s20
      %p17 = scmp.ge.s32.totalorder %s16, 4
      %s23 = sphi 0, %s35
      %s24 = sphi 0, %s31
      %s25 = sphi 0, %s23
      %s26 = sphi 0, %s24
      %s27 = sphi 0, %s25
      %s28 = sphi 0, %s26
      %s38 = sphi 0, %s40
      %s41 = sphi 0, %s38
      %s42 = sphi 0, %s41
      %s58 = sphi 0, %s42
      %s64 = sphi 0, %s66
      %s67 = sphi 0, %s64
      %s68 = sphi 0, %s67
      %s84 = sphi 0, %s68
      %s88 = sphi 0, %s88
      %s90 = sphi 0, %s88
      %s91 = sphi 0, %s90
      %s105 = sphi 0, %s91
      %s111 = sphi 0, %s113
      %s114 = sphi 0, %s111
      %s115 = sphi 0, %s114
      %s131 = sphi 0, %s115
      %s137 = sphi 0, %s139
      %s140 = sphi 0, %s137
      %s141 = sphi 0, %s140
      %s157 = sphi 0, %s141
      %s163 = sphi 0, %s165
      %s166 = sphi 0, %s163
      %s167 = sphi 0, %s166
      %s183 = sphi 0, %s167
      %s189 = sphi 0, %s191
      %s192 = sphi 0, %s189
      %s193 = sphi 0, %s192
      %s209 = sphi 0, %s193
      %s215 = sphi 0, %s217
      %s218 = sphi 0, %s215
      %s219 = sphi 0, %s218
      %s235 = sphi 0, %s219
      %s241 = sphi 0, %s243
      %s244 = sphi 0, %s241
      %s245 = sphi 0, %s244
      %s261 = sphi 0, %s245
      %s267 = sphi 0, %s269
      %s270 = sphi 0, %s267
      %s271 = sphi 0, %s270
      %s287 = sphi 0, %s271
    $region4: #{tpu_custom_call.1} parent=1 // loop_header_branch
      %19 = sbr.rel (%p17) target = $region8
    $region5: #{tpu_custom_call.1} parent=1 // loop_body
      %s21 = ssub.s32 %s16, 1
      %s22 = ssub.s32 %s16, 2
      %s29 = sadd.s32 1, %s24
      %p30 = scmp.ge.s32.totalorder %s29, 2
      %s31 = scalar_select %p30, 0, %s29
      %s32 = sadd.s32 1, %s23
      %s33 = scalar_select %p30, %s32, %s23
      %p34 = scmp.ge.s32.totalorder %s33, 1
      %s35 = scalar_select %p34, 0, %s33
      %s36 = ssub.s32 %s23, %s35
      %p37 = scmp.eq.s32.totalorder %s36, 0
      %s39 = sadd.s32 %s38, 1
      %s40 = scalar_select %p37, %s38, %s39
      %p43 = pneg %p37
      %p44 = scmp.eq.s32.totalorder %s16, 1
      %p45 = por %p43, %p44
      %p46 = scmp.ne.s32.totalorder %s38, %s41
      %p47 = scmp.eq.s32.totalorder %s16, 0
      %p48 = por %p46, %p47
      %p49 = scmp.ne.s32.totalorder %s38, %s41
      %p50 = scmp.eq.s32.totalorder %s21, 1
      %p51 = por %p49, %p50
      %p52 = scmp.ne.s32.totalorder %s41, %s42
      %p53 = scmp.eq.s32.totalorder %s21, 0
      %p54 = por %p52, %p53
      %p55 = scmp.ne.s32.totalorder %s41, %s42
      %p56 = scmp.eq.s32.totalorder %s22, 1
      %p57 = por %p55, %p56
      %p59 = scmp.ne.s32.totalorder %s42, %s58
      %p60 = scmp.eq.s32.totalorder %s22, 0
      %p61 = por %p59, %p60
      %s62 = ssub.s32 %s23, %s35
      %p63 = scmp.eq.s32.totalorder %s62, 0
      %s65 = sadd.s32 %s64, 1
      %s66 = scalar_select %p63, %s64, %s65
      %p69 = pneg %p63
      %p70 = scmp.eq.s32.totalorder %s16, 1
      %p71 = por %p69, %p70
      %p72 = scmp.ne.s32.totalorder %s64, %s67
      %p73 = scmp.eq.s32.totalorder %s16, 0
      %p74 = por %p72, %p73
      %p75 = scmp.ne.s32.totalorder %s64, %s67
      %p76 = scmp.eq.s32.totalorder %s21, 1
      %p77 = por %p75, %p76
      %p78 = scmp.ne.s32.totalorder %s67, %s68
      %p79 = scmp.eq.s32.totalorder %s21, 0
      %p80 = por %p78, %p79
      %p81 = scmp.ne.s32.totalorder %s67, %s68
      %p82 = scmp.eq.s32.totalorder %s22, 1
      %p83 = por %p81, %p82
      %p85 = scmp.ne.s32.totalorder %s68, %s84
      %p86 = scmp.eq.s32.totalorder %s22, 0
      %p87 = por %p85, %p86
      %s89 = sadd.s32 %s88, 1
      %p92 = scmp.eq.s32.totalorder %s16, 1
      %p93 = scmp.ne.s32.totalorder %s88, %s90
      %p94 = scmp.eq.s32.totalorder %s16, 0
      %p95 = por %p93, %p94
      %p96 = scmp.ne.s32.totalorder %s88, %s90
      %p97 = scmp.eq.s32.totalorder %s21, 1
      %p98 = por %p96, %p97
      %p99 = scmp.ne.s32.totalorder %s90, %s91
      %p100 = scmp.eq.s32.totalorder %s21, 0
      %p101 = por %p99, %p100
      %p102 = scmp.ne.s32.totalorder %s90, %s91
      %p103 = scmp.eq.s32.totalorder %s22, 1
      %p104 = por %p102, %p103
      %p106 = scmp.ne.s32.totalorder %s91, %s105
      %p107 = scmp.eq.s32.totalorder %s22, 0
      %p108 = por %p106, %p107
      %s109 = ssub.s32 %s24, %s31
      %p110 = scmp.eq.s32.totalorder %s109, 0
      %s112 = sadd.s32 %s111, 1
      %s113 = scalar_select %p110, %s111, %s112
      %p116 = pneg %p110
      %p117 = scmp.eq.s32.totalorder %s16, 1
      %p118 = por %p116, %p117
      %p119 = scmp.ne.s32.totalorder %s111, %s114
      %p120 = scmp.eq.s32.totalorder %s16, 0
      %p121 = por %p119, %p120
      %p122 = scmp.ne.s32.totalorder %s111, %s114
      %p123 = scmp.eq.s32.totalorder %s21, 1
      %p124 = por %p122, %p123
      %p125 = scmp.ne.s32.totalorder %s114, %s115
      %p126 = scmp.eq.s32.totalorder %s21, 0
      %p127 = por %p125, %p126
      %p128 = scmp.ne.s32.totalorder %s114, %s115
      %p129 = scmp.eq.s32.totalorder %s22, 1
      %p130 = por %p128, %p129
      %p132 = scmp.ne.s32.totalorder %s115, %s131
      %p133 = scmp.eq.s32.totalorder %s22, 0
      %p134 = por %p132, %p133
      %s135 = ssub.s32 %s24, %s31
      %p136 = scmp.eq.s32.totalorder %s135, 0
      %s138 = sadd.s32 %s137, 1
      %s139 = scalar_select %p136, %s137, %s138
      %p142 = pneg %p136
      %p143 = scmp.eq.s32.totalorder %s16, 1
      %p144 = por %p142, %p143
      %p145 = scmp.ne.s32.totalorder %s137, %s140
      %p146 = scmp.eq.s32.totalorder %s16, 0
      %p147 = por %p145, %p146
      %p148 = scmp.ne.s32.totalorder %s137, %s140
      %p149 = scmp.eq.s32.totalorder %s21, 1
      %p150 = por %p148, %p149
      %p151 = scmp.ne.s32.totalorder %s140, %s141
      %p152 = scmp.eq.s32.totalorder %s21, 0
      %p153 = por %p151, %p152
      %p154 = scmp.ne.s32.totalorder %s140, %s141
      %p155 = scmp.eq.s32.totalorder %s22, 1
      %p156 = por %p154, %p155
      %p158 = scmp.ne.s32.totalorder %s141, %s157
      %p159 = scmp.eq.s32.totalorder %s22, 0
      %p160 = por %p158, %p159
      %s161 = ssub.s32 %s24, %s31
      %p162 = scmp.eq.s32.totalorder %s161, 0
      %s164 = sadd.s32 %s163, 1
      %s165 = scalar_select %p162, %s163, %s164
      %p168 = pneg %p162
      %p169 = scmp.eq.s32.totalorder %s16, 1
      %p170 = por %p168, %p169
      %p171 = scmp.ne.s32.totalorder %s163, %s166
      %p172 = scmp.eq.s32.totalorder %s16, 0
      %p173 = por %p171, %p172
      %p174 = scmp.ne.s32.totalorder %s163, %s166
      %p175 = scmp.eq.s32.totalorder %s21, 1
      %p176 = por %p174, %p175
      %p177 = scmp.ne.s32.totalorder %s166, %s167
      %p178 = scmp.eq.s32.totalorder %s21, 0
      %p179 = por %p177, %p178
      %p180 = scmp.ne.s32.totalorder %s166, %s167
      %p181 = scmp.eq.s32.totalorder %s22, 1
      %p182 = por %p180, %p181
      %p184 = scmp.ne.s32.totalorder %s167, %s183
      %p185 = scmp.eq.s32.totalorder %s22, 0
      %p186 = por %p184, %p185
      %s187 = ssub.s32 %s24, %s31
      %p188 = scmp.eq.s32.totalorder %s187, 0
      %s190 = sadd.s32 %s189, 1
      %s191 = scalar_select %p188, %s189, %s190
      %p194 = pneg %p188
      %p195 = scmp.eq.s32.totalorder %s16, 1
      %p196 = por %p194, %p195
      %p197 = scmp.ne.s32.totalorder %s189, %s192
      %p198 = scmp.eq.s32.totalorder %s16, 0
      %p199 = por %p197, %p198
      %p200 = scmp.ne.s32.totalorder %s189, %s192
      %p201 = scmp.eq.s32.totalorder %s21, 1
      %p202 = por %p200, %p201
      %p203 = scmp.ne.s32.totalorder %s192, %s193
      %p204 = scmp.eq.s32.totalorder %s21, 0
      %p205 = por %p203, %p204
      %p206 = scmp.ne.s32.totalorder %s192, %s193
      %p207 = scmp.eq.s32.totalorder %s22, 1
      %p208 = por %p206, %p207
      %p210 = scmp.ne.s32.totalorder %s193, %s209
      %p211 = scmp.eq.s32.totalorder %s22, 0
      %p212 = por %p210, %p211
      %s213 = ssub.s32 %s24, %s31
      %p214 = scmp.eq.s32.totalorder %s213, 0
      %s216 = sadd.s32 %s215, 1
      %s217 = scalar_select %p214, %s215, %s216
      %p220 = pneg %p214
      %p221 = scmp.eq.s32.totalorder %s16, 1
      %p222 = por %p220, %p221
      %p223 = scmp.ne.s32.totalorder %s215, %s218
      %p224 = scmp.eq.s32.totalorder %s16, 0
      %p225 = por %p223, %p224
      %p226 = scmp.ne.s32.totalorder %s215, %s218
      %p227 = scmp.eq.s32.totalorder %s21, 1
      %p228 = por %p226, %p227
      %p229 = scmp.ne.s32.totalorder %s218, %s219
      %p230 = scmp.eq.s32.totalorder %s21, 0
      %p231 = por %p229, %p230
      %p232 = scmp.ne.s32.totalorder %s218, %s219
      %p233 = scmp.eq.s32.totalorder %s22, 1
      %p234 = por %p232, %p233
      %p236 = scmp.ne.s32.totalorder %s219, %s235
      %p237 = scmp.eq.s32.totalorder %s22, 0
      %p238 = por %p236, %p237
      %s239 = ssub.s32 %s24, %s31
      %p240 = scmp.eq.s32.totalorder %s239, 0
      %s242 = sadd.s32 %s241, 1
      %s243 = scalar_select %p240, %s241, %s242
      %p246 = pneg %p240
      %p247 = scmp.eq.s32.totalorder %s16, 1
      %p248 = por %p246, %p247
      %p249 = scmp.ne.s32.totalorder %s241, %s244
      %p250 = scmp.eq.s32.totalorder %s16, 0
      %p251 = por %p249, %p250
      %p252 = scmp.ne.s32.totalorder %s241, %s244
      %p253 = scmp.eq.s32.totalorder %s21, 1
      %p254 = por %p252, %p253
      %p255 = scmp.ne.s32.totalorder %s244, %s245
      %p256 = scmp.eq.s32.totalorder %s21, 0
      %p257 = por %p255, %p256
      %p258 = scmp.ne.s32.totalorder %s244, %s245
      %p259 = scmp.eq.s32.totalorder %s22, 1
      %p260 = por %p258, %p259
      %p262 = scmp.ne.s32.totalorder %s245, %s261
      %p263 = scmp.eq.s32.totalorder %s22, 0
      %p264 = por %p262, %p263
      %s265 = ssub.s32 %s23, %s35
      %p266 = scmp.eq.s32.totalorder %s265, 0
      %s268 = sadd.s32 %s267, 1
      %s269 = scalar_select %p266, %s267, %s268
      %p272 = pneg %p266
      %p273 = scmp.eq.s32.totalorder %s16, 1
      %p274 = por %p272, %p273
      %p275 = scmp.ne.s32.totalorder %s267, %s270
      %p276 = scmp.eq.s32.totalorder %s16, 0
      %p277 = por %p275, %p276
      %p278 = scmp.ne.s32.totalorder %s267, %s270
      %p279 = scmp.eq.s32.totalorder %s21, 1
      %p280 = por %p278, %p279
      %p281 = scmp.ne.s32.totalorder %s270, %s271
      %p282 = scmp.eq.s32.totalorder %s21, 0
      %p283 = por %p281, %p282
      %p284 = scmp.ne.s32.totalorder %s270, %s271
      %p285 = scmp.eq.s32.totalorder %s22, 1
      %p286 = por %p284, %p285
      %p288 = scmp.ne.s32.totalorder %s271, %s287
      %p289 = scmp.eq.s32.totalorder %s22, 0
      %p290 = por %p288, %p289
      %p291 = scmp.le.s32.totalorder 1, %s16
      %p292 = scmp.lt.s32.totalorder %s16, 3
      %p293 = pnand %p291, %p292
      %p294 = pneg %p293
      // Predicated region
      $region9: #{tpu_custom_call.1} parent=5 // pred_check
        _
      $region10: #{tpu_custom_call.1} parent=5 // pred_check_branch
        %296 = sbr.rel (%p293) target = $region12
      $region11: #{tpu_custom_call.1} parent=5 // pred_region
        %s297 = ssub.s32 %s16, 1
        // Predicated region
        $region13: #{tpu_custom_call.1} parent=11 // pred_check
          %p298 = pneg %p54
        $region14: #{tpu_custom_call.1} parent=11 // pred_check_branch
          %300 = sbr.rel (%p298) target = $region16
        $region15: #{tpu_custom_call.1} parent=11 // pred_region
          %s301 = smul.u32 2, %s25
          %p302 = scmp.lt.s32.totalorder %s301, 1
          %s303 = scalar_select %p302, %s301, 1
          %s304 = smul.addr %s303, 8
          %s305 = scalar_lea.vmem %s0, %s304
          %s306 = smul.u32 2, %s25
        $region16: #{tpu_custom_call.1} parent=11 // pred_fallthru
          _
        // Predicated region
        $region17: #{tpu_custom_call.1} parent=11 // pred_check
          %p307 = pneg %p80
        $region18: #{tpu_custom_call.1} parent=11 // pred_check_branch
          %309 = sbr.rel (%p307) target = $region20
        $region19: #{tpu_custom_call.1} parent=11 // pred_region
          %s310 = smul.u32 2, %s25
          %p311 = scmp.lt.s32.totalorder %s310, 1
          %s312 = scalar_select %p311, %s310, 1
          %s313 = scalar_lea.vmem %s1, %s312
          %s314 = smul.u32 2, %s25
        $region20: #{tpu_custom_call.1} parent=11 // pred_fallthru
          _
        // Predicated region
        $region21: #{tpu_custom_call.1} parent=11 // pred_check
          %p315 = pneg %p101
        $region22: #{tpu_custom_call.1} parent=11 // pred_check_branch
          %317 = sbr.rel (%p315) target = $region24
        $region23: #{tpu_custom_call.1} parent=11 // pred_region
          _
        $region24: #{tpu_custom_call.1} parent=11 // pred_fallthru
          _
      $region12: #{tpu_custom_call.1} parent=5 // pred_fallthru
        _
      %p318 = scmp.lt.s32.totalorder %s16, 2
      // Predicated region
      $region25: #{tpu_custom_call.1} parent=5 // pred_check
        %p319 = pneg %p318
      $region26: #{tpu_custom_call.1} parent=5 // pred_check_branch
        %321 = sbr.rel (%p319) target = $region28
      $region27: #{tpu_custom_call.1} parent=5 // pred_region
        // Predicated region
        $region29: #{tpu_custom_call.1} parent=27 // pred_check
          %p322 = pneg %p121
        $region30: #{tpu_custom_call.1} parent=27 // pred_check_branch
          %324 = sbr.rel (%p322) target = $region32
        $region31: #{tpu_custom_call.1} parent=27 // pred_region
          %p325 = scmp.lt.s32.totalorder %s24, 1
          %s326 = scalar_select %p325, %s24, 1
          %s327 = smul.addr %s326, 4
          %s328 = smul.addr %s327, 8
          %s329 = scalar_lea.vmem %s3, %s328
        $region32: #{tpu_custom_call.1} parent=27 // pred_fallthru
          _
        // Predicated region
        $region33: #{tpu_custom_call.1} parent=27 // pred_check
          %p330 = pneg %p147
        $region34: #{tpu_custom_call.1} parent=27 // pred_check_branch
          %332 = sbr.rel (%p330) target = $region36
        $region35: #{tpu_custom_call.1} parent=27 // pred_region
          %p333 = scmp.lt.s32.totalorder %s24, 1
          %s334 = scalar_select %p333, %s24, 1
          %s335 = smul.addr %s334, 4
          %s336 = smul.addr %s335, 8
          %s337 = scalar_lea.vmem %s4, %s336
        $region36: #{tpu_custom_call.1} parent=27 // pred_fallthru
          _
        // Predicated region
        $region37: #{tpu_custom_call.1} parent=27 // pred_check
          %p338 = pneg %p173
        $region38: #{tpu_custom_call.1} parent=27 // pred_check_branch
          %340 = sbr.rel (%p338) target = $region40
        $region39: #{tpu_custom_call.1} parent=27 // pred_region
          %p341 = scmp.lt.s32.totalorder %s24, 1
          %s342 = scalar_select %p341, %s24, 1
          %s343 = smul.addr %s342, 8
          %s344 = scalar_lea.vmem %s5, %s343
        $region40: #{tpu_custom_call.1} parent=27 // pred_fallthru
          _
        // Predicated region
        $region41: #{tpu_custom_call.1} parent=27 // pred_check
          %p345 = pneg %p199
        $region42: #{tpu_custom_call.1} parent=27 // pred_check_branch
          %347 = sbr.rel (%p345) target = $region44
        $region43: #{tpu_custom_call.1} parent=27 // pred_region
          %p348 = scmp.lt.s32.totalorder %s24, 1
          %s349 = scalar_select %p348, %s24, 1
          %s350 = smul.addr %s349, 4
          %s351 = smul.addr %s350, 8
          %s352 = scalar_lea.vmem %s6, %s351
        $region44: #{tpu_custom_call.1} parent=27 // pred_fallthru
          _
        // Predicated region
        $region45: #{tpu_custom_call.1} parent=27 // pred_check
          %p353 = pneg %p225
        $region46: #{tpu_custom_call.1} parent=27 // pred_check_branch
          %355 = sbr.rel (%p353) target = $region48
        $region47: #{tpu_custom_call.1} parent=27 // pred_region
          %p356 = scmp.lt.s32.totalorder %s24, 1
          %s357 = scalar_select %p356, %s24, 1
          %s358 = scalar_lea.vmem %s7, %s357
        $region48: #{tpu_custom_call.1} parent=27 // pred_fallthru
          _
        // Predicated region
        $region49: #{tpu_custom_call.1} parent=27 // pred_check
          %p359 = pneg %p251
        $region50: #{tpu_custom_call.1} parent=27 // pred_check_branch
          %361 = sbr.rel (%p359) target = $region52
        $region51: #{tpu_custom_call.1} parent=27 // pred_region
          %p362 = scmp.lt.s32.totalorder %s24, 1
          %s363 = scalar_select %p362, %s24, 1
          %s364 = smul.addr %s363, 16
          %s365 = smul.addr %s364, 8
          %s366 = scalar_lea.vmem %s8, %s365
        $region52: #{tpu_custom_call.1} parent=27 // pred_fallthru
          _
      $region28: #{tpu_custom_call.1} parent=5 // pred_fallthru
        _
      %p367 = scmp.le.s32.totalorder 1, %s16
      %p368 = scmp.lt.s32.totalorder %s16, 3
      %p369 = pnand %p367, %p368
      %p370 = pneg %p369
      // Predicated region
      $region53: #{tpu_custom_call.1} parent=5 // pred_check
        _
      $region54: #{tpu_custom_call.1} parent=5 // pred_check_branch
        %372 = sbr.rel (%p369) target = $region56
      $region55: #{tpu_custom_call.1} parent=5 // pred_region
        %s373 = ssub.s32 %s16, 1
        %s374 = smul.u32 2, %s25
        %p375 = scmp.lt.s32.totalorder %s374, 1
        %s376 = scalar_select %p375, %s374, 1
        %s377 = smul.addr %s376, 8
        %s378 = scalar_lea.vmem %s0, %s377
        %p379 = pneg %p54
        %p380 = pneg %p51
        %s381 = smul.u32 2, %s25
        %p382 = scmp.lt.s32.totalorder %s381, 1
        %s383 = scalar_select %p382, %s381, 1
        %s384 = scalar_lea.vmem %s1, %s383
        %p385 = pneg %p80
        %p386 = pneg %p77
        %p387 = pneg %p101
        %p388 = pneg %p98
        %p389 = scmp.lt.s32.totalorder %s26, 1
        %s390 = scalar_select %p389, %s26, 1
        %s391 = smul.addr %s390, 4
        %s392 = smul.addr %s391, 8
        %s393 = scalar_lea.vmem %s3, %s392
        %p394 = pneg %p127
        %p395 = pneg %p124
        %p396 = scmp.lt.s32.totalorder %s26, 1
        %s397 = scalar_select %p396, %s26, 1
        %s398 = smul.addr %s397, 4
        %s399 = smul.addr %s398, 8
        %s400 = scalar_lea.vmem %s4, %s399
        %p401 = pneg %p153
        %p402 = pneg %p150
        %p403 = scmp.lt.s32.totalorder %s26, 1
        %s404 = scalar_select %p403, %s26, 1
        %s405 = smul.addr %s404, 8
        %s406 = scalar_lea.vmem %s5, %s405
        %p407 = pneg %p179
        %p408 = pneg %p176
        %p409 = scmp.lt.s32.totalorder %s26, 1
        %s410 = scalar_select %p409, %s26, 1
        %s411 = smul.addr %s410, 4
        %s412 = smul.addr %s411, 8
        %s413 = scalar_lea.vmem %s6, %s412
        %p414 = pneg %p205
        %p415 = pneg %p202
        %p416 = scmp.lt.s32.totalorder %s26, 1
        %s417 = scalar_select %p416, %s26, 1
        %s418 = scalar_lea.vmem %s7, %s417
        %p419 = pneg %p231
        %p420 = pneg %p228
        %p421 = scmp.lt.s32.totalorder %s26, 1
        %s422 = scalar_select %p421, %s26, 1
        %s423 = smul.addr %s422, 16
        %s424 = smul.addr %s423, 8
        %s425 = scalar_lea.vmem %s8, %s424
        %p426 = pneg %p257
        %p427 = pneg %p254
        %p428 = pneg %p283
        %p429 = pneg %p280
        %s430 = smul.u32 2, %s25
        %p431 = scmp.lt.s32.totalorder %s430, 1
        %s432 = scalar_select %p431, %s430, 1
        %s433 = smul.addr %s432, 8
        %s434 = scalar_lea.vmem %s0, %s433
        %s435 = smul.u32 2, %s25
        %s436 = smul.u32 2, %s25
        %p437 = scmp.lt.s32.totalorder %s436, 1
        %s438 = scalar_select %p437, %s436, 1
        %s439 = scalar_lea.vmem %s1, %s438
        %s440 = smul.u32 2, %s25
        %p441 = scmp.lt.s32.totalorder %s26, 1
        %s442 = scalar_select %p441, %s26, 1
        %s443 = smul.addr %s442, 4
        %s444 = smul.addr %s443, 8
        %s445 = scalar_lea.vmem %s3, %s444
        %p446 = scmp.lt.s32.totalorder %s26, 1
        %s447 = scalar_select %p446, %s26, 1
        %s448 = smul.addr %s447, 4
        %s449 = smul.addr %s448, 8
        %s450 = scalar_lea.vmem %s4, %s449
        %p451 = scmp.lt.s32.totalorder %s26, 1
        %s452 = scalar_select %p451, %s26, 1
        %s453 = smul.addr %s452, 8
        %s454 = scalar_lea.vmem %s5, %s453
        %p455 = scmp.lt.s32.totalorder %s26, 1
        %s456 = scalar_select %p455, %s26, 1
        %s457 = smul.addr %s456, 4
        %s458 = smul.addr %s457, 8
        %s459 = scalar_lea.vmem %s6, %s458
        %p460 = scmp.lt.s32.totalorder %s26, 1
        %s461 = scalar_select %p460, %s26, 1
        %s462 = scalar_lea.vmem %s7, %s461
        %p463 = scmp.lt.s32.totalorder %s26, 1
        %s464 = scalar_select %p463, %s26, 1
        %s465 = smul.addr %s464, 16
        %s466 = smul.addr %s465, 8
        %s467 = scalar_lea.vmem %s8, %s466
        %s468 = smul.u32 2, %s25
        %p469 = scmp.eq.s32.totalorder %s26, 0
        // Predicated region
        $region57: #{tpu_custom_call.1} parent=55 // pred_check
          %p470 = pneg %p469
        $region58: #{tpu_custom_call.1} parent=55 // pred_check_branch
          %472 = sbr.rel (%p470) target = $region60
        $region59: #{tpu_custom_call.1} parent=55 // pred_region
          %v473 = vld [vmem:[%s434] sm:$0xff]
          %v474 = vld [vmem:[%s434 + $0x8] sm:$0xff]
          %vm475 = vcmask 261120
          %476 = vst.msk [vmem:[#allocation2] sm:$0xff] %vm475, %v473
          %477 = vst.msk [vmem:[#allocation2 + $0x8] sm:$0xff] %vm475, %v474
        $region60: #{tpu_custom_call.1} parent=55 // pred_fallthru
          _
        %v478 = vld [vmem:[#allocation2] sm:$0xff]
        %v479 = vld [vmem:[#allocation2 + $0x8] sm:$0xff]
        %v480 = vld [vmem:[%s454] sm:$0x3f]
        %v481 = vld [vmem:[%s445] sm:$0xff]
        %v482 = vld [vmem:[%s445 + $0x8] sm:$0xff]
        %v483 = vld [vmem:[%s445 + $0x10] sm:$0xff]
        %v484 = vld [vmem:[%s445 + $0x18] sm:$0xff]
        %v485 = vld [vmem:[%s450] sm:$0xff]
        %v486 = vld [vmem:[%s450 + $0x8] sm:$0xff]
        %v487 = vld [vmem:[%s450 + $0x10] sm:$0xff]
        %v488 = vld [vmem:[%s450 + $0x18] sm:$0xff]
        %v489 = vld [vmem:[%s459] sm:$0xff]
        %v490 = vld [vmem:[%s459 + $0x8] sm:$0xff]
        %v491 = vld [vmem:[%s459 + $0x10] sm:$0xff]
        %v492 = vld [vmem:[%s459 + $0x18] sm:$0xff]
        %v493 = vld [vmem:[%s462] sm:$0x1]
        %v494 = vld [vmem:[%s467] sm:$0xff]
        %v495 = vld [vmem:[%s467 + $0x8] sm:$0xff]
        %v496 = vld [vmem:[%s467 + $0x10] sm:$0xff]
        %v497 = vld [vmem:[%s467 + $0x18] sm:$0xff]
        %v498 = vld [vmem:[%s467 + $0x20] sm:$0xff]
        %v499 = vld [vmem:[%s467 + $0x28] sm:$0xff]
        %v500 = vld [vmem:[%s467 + $0x30] sm:$0xff]
        %v501 = vld [vmem:[%s467 + $0x38] sm:$0xff]
        %v502 = vld [vmem:[%s467 + $0x40] sm:$0xff]
        %v503 = vld [vmem:[%s467 + $0x48] sm:$0xff]
        %v504 = vld [vmem:[%s467 + $0x50] sm:$0xff]
        %v505 = vld [vmem:[%s467 + $0x58] sm:$0xff]
        %v506 = vld [vmem:[%s467 + $0x60] sm:$0xff]
        %v507 = vld [vmem:[%s467 + $0x68] sm:$0xff]
        %v508 = vld [vmem:[%s467 + $0x70] sm:$0xff]
        %v509 = vld [vmem:[%s467 + $0x78] sm:$0xff]
        %v510 = vld [vmem:[%s439] sm:$0x1]
        %v511 = vld [vmem:[%s439 + $0x1] sm:$0x1]
        %vm512 = vcmp.eq.f32.partialorder %v510, 0.0
        %vm513 = vcmp.eq.f32.partialorder %v511, 0.0
        %v514 = vsel %vm512, -1e+30, 0.0
        %v515 = vsel %vm513, -1e+30, 0.0
        %vm516 = vcmask 261120
        %v517 = vsel %vm516, %v478, 0.0
        %518 = vadd.xlane.f32.xlu0 %v517
        %v519 = vpop.xlane.xlu0 %518
        %v520 = vsel %vm516, %v479, 0.0
        %521 = vadd.xlane.f32.xlu0 %v520
        %v522 = vpop.xlane.xlu0 %521
        %v523 = vrcp.pop 32.0
        %v524 = vmul.f32 32.0, %v523
        %v525 = vsub.f32 1.0, %v524
        %v526 = vmul.f32 %v523, %v525
        %v527 = vadd.f32 %v523, %v526
        %vm528 = vweird.f32 %v523
        %v529 = vsel %vm528, %v523, %v527
        %v530 = vmul.f32 %v519, %v529
        %v531 = vmul.f32 %v522, %v529
        %v532 = vsub.f32 %v478, %v530
        %v533 = vsub.f32 %v479, %v531
        %v534 = vmul.f32 %v532, %v532
        %v535 = vmul.f32 %v533, %v533
        %v536 = vsel %vm516, %v534, 0.0
        %537 = vadd.xlane.f32.xlu0 %v536
        %v538 = vpop.xlane.xlu0 %537
        %v539 = vsel %vm516, %v535, 0.0
        %540 = vadd.xlane.f32.xlu0 %v539
        %v541 = vpop.xlane.xlu0 %540
        %v542 = vmul.f32 %v538, %v529
        %v543 = vmul.f32 %v541, %v529
        %v544 = vadd.f32 %v542, 1e-05
        %v545 = vadd.f32 %v543, 1e-05
        %v546 = vrsqrt.pop %v544
        %v547 = vmul.f32 %v546, %v544
        %v548 = vmul.f32 %v547, %v546
        %v549 = vmul.f32 0.5, %v548
        %v550 = vsub.f32 1.5, %v549
        %v551 = vmul.f32 %v546, %v550
        %vm552 = vweird.f32 %v544
        %vm553 = vweird.f32 %v546
        %vm554 = vmor %vm552, %vm553
        %v555 = vsel %vm554, %v546, %v551
        %v556 = vrsqrt.pop %v545
        %v557 = vmul.f32 %v556, %v545
        %v558 = vmul.f32 %v557, %v556
        %v559 = vmul.f32 0.5, %v558
        %v560 = vsub.f32 1.5, %v559
        %v561 = vmul.f32 %v556, %v560
        %vm562 = vweird.f32 %v545
        %vm563 = vweird.f32 %v556
        %vm564 = vmor %vm562, %vm563
        %v565 = vsel %vm564, %v556, %v561
        %v566 = vmul.f32 %v532, %v555
        %v567 = vmul.f32 %v533, %v565
        %v568 = vperm.slane %v480, 0
        %v569 = vmul.f32 %v566, %v568
        %v570 = vmul.f32 %v567, %v568
        %v571 = vperm.slane %v480, 1
        %v572 = vadd.f32 %v569, %v571
        %v573 = vadd.f32 %v570, %v571
        %v575 = vsel %vm516, %v572, 0
        %v578 = vsel %vm516, %v573, 0
        %580 = vmatpush.msra.mxu0 0.0
        %581 = vmatpush.msra.mxu0 0.0
        %582 = vmatpush.msra.mxu0 0.0
        %583 = vmatpush.msra.mxu0 0.0
        %584 = vmatpush.msra.mxu0 0.0
        %585 = vmatpush.msra.mxu0 0.0
        %586 = vmatpush.msra.mxu0 0.0
        %587 = vmatpush.msra.mxu0 0.0
        %588 = vmatpush.msra.mxu0 0.0
        %589 = vmatpush.msra.mxu0 0.0
        %590 = vmatpush.msra.mxu0 0.0
        %591 = vmatpush.msra.mxu0 0.0
        %592 = vmatpush.msra.mxu0 %v484
        %593 = vmatpush.msra.mxu0 %v483
        %594 = vmatpush.msra.mxu0 %v482
        %595 = vmatpush.msra.mxu0 %v481
        %596 = vmatmul.f32.gmra.mxu0 %v575
        %v597 = vpop.f32.mrf.mxu0
        %v598 = vadd.f32 0.0, %v597
        %599 = vmatmul.f32.gmra.mxu0 %v578
        %v600 = vpop.f32.mrf.mxu0
        %v601 = vadd.f32 0.0, %v600
        %602 = vdwg.mxu0
        %v603 = vmul.f32 %v598, 0.17677669
        %v604 = vmul.f32 %v601, 0.17677669
        %v607 = vperm.slane %v514, 0
        %v608 = vperm.slane %v515, 0
        %612 = vrot.lane.b32.xlu0 %v598, 96
        %v613 = vpop.permute.xlu0 %612
        %vm614 = vcmask 64512
        %v616 = vsel %vm614, %v603, 0
        %v618 = vsel %vm614, %v613, 0
        %620 = vmatpush.xpose.msra.mxu0 0.0
        %621 = vmatpush.xpose.msra.mxu0 0.0
        %622 = vmatpush.xpose.msra.mxu0 0.0
        %623 = vmatpush.xpose.msra.mxu0 0.0
        %624 = vmatpush.xpose.msra.mxu0 0.0
        %625 = vmatpush.xpose.msra.mxu0 0.0
        %626 = vmatpush.xpose.msra.mxu0 0.0
        %627 = vmatpush.xpose.msra.mxu0 0.0
        %628 = vmatpush.xpose.msra.mxu0 0.0
        %629 = vmatpush.xpose.msra.mxu0 0.0
        %630 = vmatpush.xpose.msra.mxu0 0.0
        %631 = vmatpush.xpose.msra.mxu0 0.0
        %632 = vmatpush.xpose.msra.mxu0 0.0
        %633 = vmatpush.xpose.msra.mxu0 0.0
        %634 = vmatpush.xpose.msra.mxu0 0.0
        %635 = vmatpush.xpose.msra.mxu0 %v618
        %636 = vmatmul.f32.gmra.mxu0 %v616
        %v637 = vpop.f32.mrf.mxu0
        %v638 = vadd.f32 %v607, %v637
        %639 = vdwg.mxu0
        %641 = vrot.lane.b32.xlu0 %v601, 96
        %v642 = vpop.permute.xlu0 %641
        %v644 = vsel %vm614, %v604, 0
        %v646 = vsel %vm614, %v642, 0
        %648 = vmatpush.xpose.msra.mxu0 0.0
        %649 = vmatpush.xpose.msra.mxu0 0.0
        %650 = vmatpush.xpose.msra.mxu0 0.0
        %651 = vmatpush.xpose.msra.mxu0 0.0
        %652 = vmatpush.xpose.msra.mxu0 0.0
        %653 = vmatpush.xpose.msra.mxu0 0.0
        %654 = vmatpush.xpose.msra.mxu0 0.0
        %655 = vmatpush.xpose.msra.mxu0 0.0
        %656 = vmatpush.xpose.msra.mxu0 0.0
        %657 = vmatpush.xpose.msra.mxu0 0.0
        %658 = vmatpush.xpose.msra.mxu0 0.0
        %659 = vmatpush.xpose.msra.mxu0 0.0
        %660 = vmatpush.xpose.msra.mxu0 0.0
        %661 = vmatpush.xpose.msra.mxu0 0.0
        %662 = vmatpush.xpose.msra.mxu0 0.0
        %663 = vmatpush.xpose.msra.mxu0 %v646
        %664 = vmatmul.f32.gmra.mxu0 %v644
        %v665 = vpop.f32.mrf.mxu0
        %v666 = vadd.f32 %v608, %v665
        %667 = vdwg.mxu0
        %v668 = vsel %vm614, %v638, -inf
        %669 = vmax.xlane.f32.xlu0 %v668
        %v670 = vpop.xlane.xlu0 %669
        %v671 = vsel %vm614, %v666, -inf
        %672 = vmax.xlane.f32.xlu0 %v671
        %v673 = vpop.xlane.xlu0 %672
        %v674 = vsub.f32 %v638, %v670
        %v675 = vsub.f32 %v666, %v673
        %v676 = vmul.f32 %v674, 1.442695
        %v677 = vpow.pop %v676
        %v678 = vmul.f32 %v675, 1.442695
        %v679 = vpow.pop %v678
        %v680 = vsel %vm614, %v677, 0.0
        %681 = vadd.xlane.f32.xlu0 %v680
        %v682 = vpop.xlane.xlu0 %681
        %v683 = vsel %vm614, %v679, 0.0
        %684 = vadd.xlane.f32.xlu0 %v683
        %v685 = vpop.xlane.xlu0 %684
        %v686 = vrcp.pop %v682
        %v687 = vrcp.pop %v685
        %v688 = vmul.f32 %v682, %v686
        %v689 = vmul.f32 %v685, %v687
        %v690 = vsub.f32 2.0, %v688
        %v691 = vsub.f32 2.0, %v689
        %v692 = vmul.f32 %v686, %v690
        %v693 = vmul.f32 %v687, %v691
        %v694 = vmul.f32 %v677, %v692
        %v695 = vmul.f32 %v679, %v693
        %696 = vrot.lane.b32.xlu0 %v598, 64
        %v697 = vpop.permute.xlu0 %696
        %v700 = vsel %vm614, %v694, 0
        %702 = vmatpush.msra.mxu0 0.0
        %703 = vmatpush.msra.mxu0 0.0
        %704 = vmatpush.msra.mxu0 0.0
        %705 = vmatpush.msra.mxu0 0.0
        %706 = vmatpush.msra.mxu0 0.0
        %707 = vmatpush.msra.mxu0 0.0
        %708 = vmatpush.msra.mxu0 0.0
        %709 = vmatpush.msra.mxu0 0.0
        %710 = vmatpush.msra.mxu0 0.0
        %711 = vmatpush.msra.mxu0 0.0
        %712 = vmatpush.msra.mxu0 0.0
        %713 = vmatpush.msra.mxu0 0.0
        %714 = vmatpush.msra.mxu0 0.0
        %715 = vmatpush.msra.mxu0 0.0
        %716 = vmatpush.msra.mxu0 0.0
        %717 = vmatpush.msra.mxu0 %v697
        %718 = vmatmul.f32.gmra.mxu0 %v700
        %v719 = vpop.f32.mrf.mxu0
        %v720 = vadd.f32 0.0, %v719
        %721 = vdwg.mxu0
        %722 = vrot.lane.b32.xlu0 %v601, 64
        %v723 = vpop.permute.xlu0 %722
        %v726 = vsel %vm614, %v695, 0
        %728 = vmatpush.msra.mxu0 0.0
        %729 = vmatpush.msra.mxu0 0.0
        %730 = vmatpush.msra.mxu0 0.0
        %731 = vmatpush.msra.mxu0 0.0
        %732 = vmatpush.msra.mxu0 0.0
        %733 = vmatpush.msra.mxu0 0.0
        %734 = vmatpush.msra.mxu0 0.0
        %735 = vmatpush.msra.mxu0 0.0
        %736 = vmatpush.msra.mxu0 0.0
        %737 = vmatpush.msra.mxu0 0.0
        %738 = vmatpush.msra.mxu0 0.0
        %739 = vmatpush.msra.mxu0 0.0
        %740 = vmatpush.msra.mxu0 0.0
        %741 = vmatpush.msra.mxu0 0.0
        %742 = vmatpush.msra.mxu0 0.0
        %743 = vmatpush.msra.mxu0 %v723
        %744 = vmatmul.f32.gmra.mxu0 %v726
        %v745 = vpop.f32.mrf.mxu0
        %v746 = vadd.f32 0.0, %v745
        %747 = vdwg.mxu0
        %748 = vst.msk [vmem:[#allocation3] sm:$0xff] %vm614, %v720
        %749 = vst.msk [vmem:[#allocation3 + $0x8] sm:$0xff] %vm614, %v746
        %750 = vrot.lane.b32.xlu0 %v603, 120
        %v751 = vpop.permute.xlu0 %750
        %752 = vrot.lane.b32.xlu0 %v598, 88
        %v753 = vpop.permute.xlu0 %752
        %v754 = vsel %vm614, %v751, 0
        %v756 = vsel %vm614, %v753, 0
        %758 = vmatpush.xpose.msra.mxu0 0.0
        %759 = vmatpush.xpose.msra.mxu0 0.0
        %760 = vmatpush.xpose.msra.mxu0 0.0
        %761 = vmatpush.xpose.msra.mxu0 0.0
        %762 = vmatpush.xpose.msra.mxu0 0.0
        %763 = vmatpush.xpose.msra.mxu0 0.0
        %764 = vmatpush.xpose.msra.mxu0 0.0
        %765 = vmatpush.xpose.msra.mxu0 0.0
        %766 = vmatpush.xpose.msra.mxu0 0.0
        %767 = vmatpush.xpose.msra.mxu0 0.0
        %768 = vmatpush.xpose.msra.mxu0 0.0
        %769 = vmatpush.xpose.msra.mxu0 0.0
        %770 = vmatpush.xpose.msra.mxu0 0.0
        %771 = vmatpush.xpose.msra.mxu0 0.0
        %772 = vmatpush.xpose.msra.mxu0 0.0
        %773 = vmatpush.xpose.msra.mxu0 %v756
        %774 = vmatmul.f32.gmra.mxu0 %v754
        %v775 = vpop.f32.mrf.mxu0
        %v776 = vadd.f32 %v607, %v775
        %777 = vdwg.mxu0
        %778 = vrot.lane.b32.xlu0 %v604, 120
        %v779 = vpop.permute.xlu0 %778
        %780 = vrot.lane.b32.xlu0 %v601, 88
        %v781 = vpop.permute.xlu0 %780
        %v782 = vsel %vm614, %v779, 0
        %v784 = vsel %vm614, %v781, 0
        %786 = vmatpush.xpose.msra.mxu0 0.0
        %787 = vmatpush.xpose.msra.mxu0 0.0
        %788 = vmatpush.xpose.msra.mxu0 0.0
        %789 = vmatpush.xpose.msra.mxu0 0.0
        %790 = vmatpush.xpose.msra.mxu0 0.0
        %791 = vmatpush.xpose.msra.mxu0 0.0
        %792 = vmatpush.xpose.msra.mxu0 0.0
        %793 = vmatpush.xpose.msra.mxu0 0.0
        %794 = vmatpush.xpose.msra.mxu0 0.0
        %795 = vmatpush.xpose.msra.mxu0 0.0
        %796 = vmatpush.xpose.msra.mxu0 0.0
        %797 = vmatpush.xpose.msra.mxu0 0.0
        %798 = vmatpush.xpose.msra.mxu0 0.0
        %799 = vmatpush.xpose.msra.mxu0 0.0
        %800 = vmatpush.xpose.msra.mxu0 0.0
        %801 = vmatpush.xpose.msra.mxu0 %v784
        %802 = vmatmul.f32.gmra.mxu0 %v782
        %v803 = vpop.f32.mrf.mxu0
        %v804 = vadd.f32 %v608, %v803
        %805 = vdwg.mxu0
        %v806 = vsel %vm614, %v776, -inf
        %807 = vmax.xlane.f32.xlu0 %v806
        %v808 = vpop.xlane.xlu0 %807
        %v809 = vsel %vm614, %v804, -inf
        %810 = vmax.xlane.f32.xlu0 %v809
        %v811 = vpop.xlane.xlu0 %810
        %v812 = vsub.f32 %v776, %v808
        %v813 = vsub.f32 %v804, %v811
        %v814 = vmul.f32 %v812, 1.442695
        %v815 = vpow.pop %v814
        %v816 = vmul.f32 %v813, 1.442695
        %v817 = vpow.pop %v816
        %v818 = vsel %vm614, %v815, 0.0
        %819 = vadd.xlane.f32.xlu0 %v818
        %v820 = vpop.xlane.xlu0 %819
        %v821 = vsel %vm614, %v817, 0.0
        %822 = vadd.xlane.f32.xlu0 %v821
        %v823 = vpop.xlane.xlu0 %822
        %v824 = vrcp.pop %v820
        %v825 = vrcp.pop %v823
        %v826 = vmul.f32 %v820, %v824
        %v827 = vmul.f32 %v823, %v825
        %v828 = vsub.f32 2.0, %v826
        %v829 = vsub.f32 2.0, %v827
        %v830 = vmul.f32 %v824, %v828
        %v831 = vmul.f32 %v825, %v829
        %v832 = vmul.f32 %v815, %v830
        %v833 = vmul.f32 %v817, %v831
        %834 = vrot.lane.b32.xlu0 %v598, 56
        %v835 = vpop.permute.xlu0 %834
        %v838 = vsel %vm614, %v832, 0
        %840 = vmatpush.msra.mxu0 0.0
        %841 = vmatpush.msra.mxu0 0.0
        %842 = vmatpush.msra.mxu0 0.0
        %843 = vmatpush.msra.mxu0 0.0
        %844 = vmatpush.msra.mxu0 0.0
        %845 = vmatpush.msra.mxu0 0.0
        %846 = vmatpush.msra.mxu0 0.0
        %847 = vmatpush.msra.mxu0 0.0
        %848 = vmatpush.msra.mxu0 0.0
        %849 = vmatpush.msra.mxu0 0.0
        %850 = vmatpush.msra.mxu0 0.0
        %851 = vmatpush.msra.mxu0 0.0
        %852 = vmatpush.msra.mxu0 0.0
        %853 = vmatpush.msra.mxu0 0.0
        %854 = vmatpush.msra.mxu0 0.0
        %855 = vmatpush.msra.mxu0 %v835
        %856 = vmatmul.f32.gmra.mxu0 %v838
        %v857 = vpop.f32.mrf.mxu0
        %v858 = vadd.f32 0.0, %v857
        %859 = vdwg.mxu0
        %860 = vrot.lane.b32.xlu0 %v601, 56
        %v861 = vpop.permute.xlu0 %860
        %v864 = vsel %vm614, %v833, 0
        %866 = vmatpush.msra.mxu0 0.0
        %867 = vmatpush.msra.mxu0 0.0
        %868 = vmatpush.msra.mxu0 0.0
        %869 = vmatpush.msra.mxu0 0.0
        %870 = vmatpush.msra.mxu0 0.0
        %871 = vmatpush.msra.mxu0 0.0
        %872 = vmatpush.msra.mxu0 0.0
        %873 = vmatpush.msra.mxu0 0.0
        %874 = vmatpush.msra.mxu0 0.0
        %875 = vmatpush.msra.mxu0 0.0
        %876 = vmatpush.msra.mxu0 0.0
        %877 = vmatpush.msra.mxu0 0.0
        %878 = vmatpush.msra.mxu0 0.0
        %879 = vmatpush.msra.mxu0 0.0
        %880 = vmatpush.msra.mxu0 0.0
        %881 = vmatpush.msra.mxu0 %v861
        %882 = vmatmul.f32.gmra.mxu0 %v864
        %v883 = vpop.f32.mrf.mxu0
        %v884 = vadd.f32 0.0, %v883
        %885 = vdwg.mxu0
        %888 = vrot.lane.b32.xlu0 %v858, 8
        %v889 = vpop.permute.xlu0 %888
        %890 = vrot.lane.b32.xlu0 %v884, 8
        %v891 = vpop.permute.xlu0 %890
        %vm894 = vcmask 130112
        %895 = vst.msk [vmem:[#allocation3] sm:$0xff] %vm894, %v889
        %896 = vst.msk [vmem:[#allocation3 + $0x8] sm:$0xff] %vm894, %v891
        %897 = vrot.lane.b32.xlu0 %v603, 112
        %v898 = vpop.permute.xlu0 %897
        %899 = vrot.lane.b32.xlu0 %v598, 80
        %v900 = vpop.permute.xlu0 %899
        %v901 = vsel %vm614, %v898, 0
        %v903 = vsel %vm614, %v900, 0
        %905 = vmatpush.xpose.msra.mxu0 0.0
        %906 = vmatpush.xpose.msra.mxu0 0.0
        %907 = vmatpush.xpose.msra.mxu0 0.0
        %908 = vmatpush.xpose.msra.mxu0 0.0
        %909 = vmatpush.xpose.msra.mxu0 0.0
        %910 = vmatpush.xpose.msra.mxu0 0.0
        %911 = vmatpush.xpose.msra.mxu0 0.0
        %912 = vmatpush.xpose.msra.mxu0 0.0
        %913 = vmatpush.xpose.msra.mxu0 0.0
        %914 = vmatpush.xpose.msra.mxu0 0.0
        %915 = vmatpush.xpose.msra.mxu0 0.0
        %916 = vmatpush.xpose.msra.mxu0 0.0
        %917 = vmatpush.xpose.msra.mxu0 0.0
        %918 = vmatpush.xpose.msra.mxu0 0.0
        %919 = vmatpush.xpose.msra.mxu0 0.0
        %920 = vmatpush.xpose.msra.mxu0 %v903
        %921 = vmatmul.f32.gmra.mxu0 %v901
        %v922 = vpop.f32.mrf.mxu0
        %v923 = vadd.f32 %v607, %v922
        %924 = vdwg.mxu0
        %925 = vrot.lane.b32.xlu0 %v604, 112
        %v926 = vpop.permute.xlu0 %925
        %927 = vrot.lane.b32.xlu0 %v601, 80
        %v928 = vpop.permute.xlu0 %927
        %v929 = vsel %vm614, %v926, 0
        %v931 = vsel %vm614, %v928, 0
        %933 = vmatpush.xpose.msra.mxu0 0.0
        %934 = vmatpush.xpose.msra.mxu0 0.0
        %935 = vmatpush.xpose.msra.mxu0 0.0
        %936 = vmatpush.xpose.msra.mxu0 0.0
        %937 = vmatpush.xpose.msra.mxu0 0.0
        %938 = vmatpush.xpose.msra.mxu0 0.0
        %939 = vmatpush.xpose.msra.mxu0 0.0
        %940 = vmatpush.xpose.msra.mxu0 0.0
        %941 = vmatpush.xpose.msra.mxu0 0.0
        %942 = vmatpush.xpose.msra.mxu0 0.0
        %943 = vmatpush.xpose.msra.mxu0 0.0
        %944 = vmatpush.xpose.msra.mxu0 0.0
        %945 = vmatpush.xpose.msra.mxu0 0.0
        %946 = vmatpush.xpose.msra.mxu0 0.0
        %947 = vmatpush.xpose.msra.mxu0 0.0
        %948 = vmatpush.xpose.msra.mxu0 %v931
        %949 = vmatmul.f32.gmra.mxu0 %v929
        %v950 = vpop.f32.mrf.mxu0
        %v951 = vadd.f32 %v608, %v950
        %952 = vdwg.mxu0
        %v953 = vsel %vm614, %v923, -inf
        %954 = vmax.xlane.f32.xlu0 %v953
        %v955 = vpop.xlane.xlu0 %954
        %v956 = vsel %vm614, %v951, -inf
        %957 = vmax.xlane.f32.xlu0 %v956
        %v958 = vpop.xlane.xlu0 %957
        %v959 = vsub.f32 %v923, %v955
        %v960 = vsub.f32 %v951, %v958
        %v961 = vmul.f32 %v959, 1.442695
        %v962 = vpow.pop %v961
        %v963 = vmul.f32 %v960, 1.442695
        %v964 = vpow.pop %v963
        %v965 = vsel %vm614, %v962, 0.0
        %966 = vadd.xlane.f32.xlu0 %v965
        %v967 = vpop.xlane.xlu0 %966
        %v968 = vsel %vm614, %v964, 0.0
        %969 = vadd.xlane.f32.xlu0 %v968
        %v970 = vpop.xlane.xlu0 %969
        %v971 = vrcp.pop %v967
        %v972 = vrcp.pop %v970
        %v973 = vmul.f32 %v967, %v971
        %v974 = vmul.f32 %v970, %v972
        %v975 = vsub.f32 2.0, %v973
        %v976 = vsub.f32 2.0, %v974
        %v977 = vmul.f32 %v971, %v975
        %v978 = vmul.f32 %v972, %v976
        %v979 = vmul.f32 %v962, %v977
        %v980 = vmul.f32 %v964, %v978
        %981 = vrot.lane.b32.xlu0 %v598, 48
        %v982 = vpop.permute.xlu0 %981
        %v985 = vsel %vm614, %v979, 0
        %987 = vmatpush.msra.mxu0 0.0
        %988 = vmatpush.msra.mxu0 0.0
        %989 = vmatpush.msra.mxu0 0.0
        %990 = vmatpush.msra.mxu0 0.0
        %991 = vmatpush.msra.mxu0 0.0
        %992 = vmatpush.msra.mxu0 0.0
        %993 = vmatpush.msra.mxu0 0.0
        %994 = vmatpush.msra.mxu0 0.0
        %995 = vmatpush.msra.mxu0 0.0
        %996 = vmatpush.msra.mxu0 0.0
        %997 = vmatpush.msra.mxu0 0.0
        %998 = vmatpush.msra.mxu0 0.0
        %999 = vmatpush.msra.mxu0 0.0
        %1000 = vmatpush.msra.mxu0 0.0
        %1001 = vmatpush.msra.mxu0 0.0
        %1002 = vmatpush.msra.mxu0 %v982
        %1003 = vmatmul.f32.gmra.mxu0 %v985
        %v1004 = vpop.f32.mrf.mxu0
        %v1005 = vadd.f32 0.0, %v1004
        %1006 = vdwg.mxu0
        %1007 = vrot.lane.b32.xlu0 %v601, 48
        %v1008 = vpop.permute.xlu0 %1007
        %v1011 = vsel %vm614, %v980, 0
        %1013 = vmatpush.msra.mxu0 0.0
        %1014 = vmatpush.msra.mxu0 0.0
        %1015 = vmatpush.msra.mxu0 0.0
        %1016 = vmatpush.msra.mxu0 0.0
        %1017 = vmatpush.msra.mxu0 0.0
        %1018 = vmatpush.msra.mxu0 0.0
        %1019 = vmatpush.msra.mxu0 0.0
        %1020 = vmatpush.msra.mxu0 0.0
        %1021 = vmatpush.msra.mxu0 0.0
        %1022 = vmatpush.msra.mxu0 0.0
        %1023 = vmatpush.msra.mxu0 0.0
        %1024 = vmatpush.msra.mxu0 0.0
        %1025 = vmatpush.msra.mxu0 0.0
        %1026 = vmatpush.msra.mxu0 0.0
        %1027 = vmatpush.msra.mxu0 0.0
        %1028 = vmatpush.msra.mxu0 %v1008
        %1029 = vmatmul.f32.gmra.mxu0 %v1011
        %v1030 = vpop.f32.mrf.mxu0
        %v1031 = vadd.f32 0.0, %v1030
        %1032 = vdwg.mxu0
        %1035 = vrot.lane.b32.xlu0 %v1005, 16
        %v1036 = vpop.permute.xlu0 %1035
        %1037 = vrot.lane.b32.xlu0 %v1031, 16
        %v1038 = vpop.permute.xlu0 %1037
        %vm1041 = vcmask 195712
        %1042 = vst.msk [vmem:[#allocation3] sm:$0xff] %vm1041, %v1036
        %1043 = vst.msk [vmem:[#allocation3 + $0x8] sm:$0xff] %vm1041, %v1038
        %1044 = vrot.lane.b32.xlu0 %v603, 104
        %v1045 = vpop.permute.xlu0 %1044
        %1046 = vrot.lane.b32.xlu0 %v598, 72
        %v1047 = vpop.permute.xlu0 %1046
        %v1048 = vsel %vm614, %v1045, 0
        %v1050 = vsel %vm614, %v1047, 0
        %1052 = vmatpush.xpose.msra.mxu0 0.0
        %1053 = vmatpush.xpose.msra.mxu0 0.0
        %1054 = vmatpush.xpose.msra.mxu0 0.0
        %1055 = vmatpush.xpose.msra.mxu0 0.0
        %1056 = vmatpush.xpose.msra.mxu0 0.0
        %1057 = vmatpush.xpose.msra.mxu0 0.0
        %1058 = vmatpush.xpose.msra.mxu0 0.0
        %1059 = vmatpush.xpose.msra.mxu0 0.0
        %1060 = vmatpush.xpose.msra.mxu0 0.0
        %1061 = vmatpush.xpose.msra.mxu0 0.0
        %1062 = vmatpush.xpose.msra.mxu0 0.0
        %1063 = vmatpush.xpose.msra.mxu0 0.0
        %1064 = vmatpush.xpose.msra.mxu0 0.0
        %1065 = vmatpush.xpose.msra.mxu0 0.0
        %1066 = vmatpush.xpose.msra.mxu0 0.0
        %1067 = vmatpush.xpose.msra.mxu0 %v1050
        %1068 = vmatmul.f32.gmra.mxu0 %v1048
        %v1069 = vpop.f32.mrf.mxu0
        %v1070 = vadd.f32 %v607, %v1069
        %1071 = vdwg.mxu0
        %1072 = vrot.lane.b32.xlu0 %v604, 104
        %v1073 = vpop.permute.xlu0 %1072
        %1074 = vrot.lane.b32.xlu0 %v601, 72
        %v1075 = vpop.permute.xlu0 %1074
        %v1076 = vsel %vm614, %v1073, 0
        %v1078 = vsel %vm614, %v1075, 0
        %1080 = vmatpush.xpose.msra.mxu0 0.0
        %1081 = vmatpush.xpose.msra.mxu0 0.0
        %1082 = vmatpush.xpose.msra.mxu0 0.0
        %1083 = vmatpush.xpose.msra.mxu0 0.0
        %1084 = vmatpush.xpose.msra.mxu0 0.0
        %1085 = vmatpush.xpose.msra.mxu0 0.0
        %1086 = vmatpush.xpose.msra.mxu0 0.0
        %1087 = vmatpush.xpose.msra.mxu0 0.0
        %1088 = vmatpush.xpose.msra.mxu0 0.0
        %1089 = vmatpush.xpose.msra.mxu0 0.0
        %1090 = vmatpush.xpose.msra.mxu0 0.0
        %1091 = vmatpush.xpose.msra.mxu0 0.0
        %1092 = vmatpush.xpose.msra.mxu0 0.0
        %1093 = vmatpush.xpose.msra.mxu0 0.0
        %1094 = vmatpush.xpose.msra.mxu0 0.0
        %1095 = vmatpush.xpose.msra.mxu0 %v1078
        %1096 = vmatmul.f32.gmra.mxu0 %v1076
        %v1097 = vpop.f32.mrf.mxu0
        %v1098 = vadd.f32 %v608, %v1097
        %1099 = vdwg.mxu0
        %v1100 = vsel %vm614, %v1070, -inf
        %1101 = vmax.xlane.f32.xlu0 %v1100
        %v1102 = vpop.xlane.xlu0 %1101
        %v1103 = vsel %vm614, %v1098, -inf
        %1104 = vmax.xlane.f32.xlu0 %v1103
        %v1105 = vpop.xlane.xlu0 %1104
        %v1106 = vsub.f32 %v1070, %v1102
        %v1107 = vsub.f32 %v1098, %v1105
        %v1108 = vmul.f32 %v1106, 1.442695
        %v1109 = vpow.pop %v1108
        %v1110 = vmul.f32 %v1107, 1.442695
        %v1111 = vpow.pop %v1110
        %v1112 = vsel %vm614, %v1109, 0.0
        %1113 = vadd.xlane.f32.xlu0 %v1112
        %v1114 = vpop.xlane.xlu0 %1113
        %v1115 = vsel %vm614, %v1111, 0.0
        %1116 = vadd.xlane.f32.xlu0 %v1115
        %v1117 = vpop.xlane.xlu0 %1116
        %v1118 = vrcp.pop %v1114
        %v1119 = vrcp.pop %v1117
        %v1120 = vmul.f32 %v1114, %v1118
        %v1121 = vmul.f32 %v1117, %v1119
        %v1122 = vsub.f32 2.0, %v1120
        %v1123 = vsub.f32 2.0, %v1121
        %v1124 = vmul.f32 %v1118, %v1122
        %v1125 = vmul.f32 %v1119, %v1123
        %v1126 = vmul.f32 %v1109, %v1124
        %v1127 = vmul.f32 %v1111, %v1125
        %1128 = vrot.lane.b32.xlu0 %v598, 40
        %v1129 = vpop.permute.xlu0 %1128
        %v1132 = vsel %vm614, %v1126, 0
        %1134 = vmatpush.msra.mxu0 0.0
        %1135 = vmatpush.msra.mxu0 0.0
        %1136 = vmatpush.msra.mxu0 0.0
        %1137 = vmatpush.msra.mxu0 0.0
        %1138 = vmatpush.msra.mxu0 0.0
        %1139 = vmatpush.msra.mxu0 0.0
        %1140 = vmatpush.msra.mxu0 0.0
        %1141 = vmatpush.msra.mxu0 0.0
        %1142 = vmatpush.msra.mxu0 0.0
        %1143 = vmatpush.msra.mxu0 0.0
        %1144 = vmatpush.msra.mxu0 0.0
        %1145 = vmatpush.msra.mxu0 0.0
        %1146 = vmatpush.msra.mxu0 0.0
        %1147 = vmatpush.msra.mxu0 0.0
        %1148 = vmatpush.msra.mxu0 0.0
        %1149 = vmatpush.msra.mxu0 %v1129
        %1150 = vmatmul.f32.gmra.mxu0 %v1132
        %v1151 = vpop.f32.mrf.mxu0
        %v1152 = vadd.f32 0.0, %v1151
        %1153 = vdwg.mxu0
        %1154 = vrot.lane.b32.xlu0 %v601, 40
        %v1155 = vpop.permute.xlu0 %1154
        %v1158 = vsel %vm614, %v1127, 0
        %1160 = vmatpush.msra.mxu0 0.0
        %1161 = vmatpush.msra.mxu0 0.0
        %1162 = vmatpush.msra.mxu0 0.0
        %1163 = vmatpush.msra.mxu0 0.0
        %1164 = vmatpush.msra.mxu0 0.0
        %1165 = vmatpush.msra.mxu0 0.0
        %1166 = vmatpush.msra.mxu0 0.0
        %1167 = vmatpush.msra.mxu0 0.0
        %1168 = vmatpush.msra.mxu0 0.0
        %1169 = vmatpush.msra.mxu0 0.0
        %1170 = vmatpush.msra.mxu0 0.0
        %1171 = vmatpush.msra.mxu0 0.0
        %1172 = vmatpush.msra.mxu0 0.0
        %1173 = vmatpush.msra.mxu0 0.0
        %1174 = vmatpush.msra.mxu0 0.0
        %1175 = vmatpush.msra.mxu0 %v1155
        %1176 = vmatmul.f32.gmra.mxu0 %v1158
        %v1177 = vpop.f32.mrf.mxu0
        %v1178 = vadd.f32 0.0, %v1177
        %1179 = vdwg.mxu0
        %1182 = vrot.lane.b32.xlu0 %v1152, 24
        %v1183 = vpop.permute.xlu0 %1182
        %1184 = vrot.lane.b32.xlu0 %v1178, 24
        %v1185 = vpop.permute.xlu0 %1184
        %vm1188 = vcmask 261312
        %1189 = vst.msk [vmem:[#allocation3] sm:$0xff] %vm1188, %v1183
        %1190 = vst.msk [vmem:[#allocation3 + $0x8] sm:$0xff] %vm1188, %v1185
        %v1191 = vld [vmem:[#allocation3] sm:$0xff]
        %v1192 = vld [vmem:[#allocation3 + $0x8] sm:$0xff]
        %v1193 = vperm.slane %v480, 2
        %v1195 = vsel %vm516, %v1191, 0
        %v1198 = vsel %vm516, %v1192, 0
        %1200 = vmatpush.msra.mxu0 0.0
        %1201 = vmatpush.msra.mxu0 0.0
        %1202 = vmatpush.msra.mxu0 0.0
        %1203 = vmatpush.msra.mxu0 0.0
        %1204 = vmatpush.msra.mxu0 0.0
        %1205 = vmatpush.msra.mxu0 0.0
        %1206 = vmatpush.msra.mxu0 0.0
        %1207 = vmatpush.msra.mxu0 0.0
        %1208 = vmatpush.msra.mxu0 0.0
        %1209 = vmatpush.msra.mxu0 0.0
        %1210 = vmatpush.msra.mxu0 0.0
        %1211 = vmatpush.msra.mxu0 0.0
        %1212 = vmatpush.msra.mxu0 %v488
        %1213 = vmatpush.msra.mxu0 %v487
        %1214 = vmatpush.msra.mxu0 %v486
        %1215 = vmatpush.msra.mxu0 %v485
        %1216 = vmatmul.f32.gmra.mxu0 %v1195
        %v1217 = vpop.f32.mrf.mxu0
        %v1218 = vadd.f32 %v1193, %v1217
        %1219 = vmatmul.f32.gmra.mxu0 %v1198
        %v1220 = vpop.f32.mrf.mxu0
        %v1221 = vadd.f32 %v1193, %v1220
        %1222 = vdwg.mxu0
        %v1223 = vadd.f32 %v478, %v1218
        %v1224 = vadd.f32 %v479, %v1221
        %v1225 = vsel %vm516, %v1223, 0.0
        %1226 = vadd.xlane.f32.xlu0 %v1225
        %v1227 = vpop.xlane.xlu0 %1226
        %v1228 = vsel %vm516, %v1224, 0.0
        %1229 = vadd.xlane.f32.xlu0 %v1228
        %v1230 = vpop.xlane.xlu0 %1229
        %v1231 = vmul.f32 %v1227, %v529
        %v1232 = vmul.f32 %v1230, %v529
        %v1233 = vsub.f32 %v1223, %v1231
        %v1234 = vsub.f32 %v1224, %v1232
        %v1235 = vmul.f32 %v1233, %v1233
        %v1236 = vmul.f32 %v1234, %v1234
        %v1237 = vsel %vm516, %v1235, 0.0
        %1238 = vadd.xlane.f32.xlu0 %v1237
        %v1239 = vpop.xlane.xlu0 %1238
        %v1240 = vsel %vm516, %v1236, 0.0
        %1241 = vadd.xlane.f32.xlu0 %v1240
        %v1242 = vpop.xlane.xlu0 %1241
        %v1243 = vmul.f32 %v1239, %v529
        %v1244 = vmul.f32 %v1242, %v529
        %v1245 = vadd.f32 %v1243, 1e-05
        %v1246 = vadd.f32 %v1244, 1e-05
        %v1247 = vrsqrt.pop %v1245
        %v1248 = vmul.f32 %v1247, %v1245
        %v1249 = vmul.f32 %v1248, %v1247
        %v1250 = vmul.f32 0.5, %v1249
        %v1251 = vsub.f32 1.5, %v1250
        %v1252 = vmul.f32 %v1247, %v1251
        %vm1253 = vweird.f32 %v1245
        %vm1254 = vweird.f32 %v1247
        %vm1255 = vmor %vm1253, %vm1254
        %v1256 = vsel %vm1255, %v1247, %v1252
        %v1257 = vrsqrt.pop %v1246
        %v1258 = vmul.f32 %v1257, %v1246
        %v1259 = vmul.f32 %v1258, %v1257
        %v1260 = vmul.f32 0.5, %v1259
        %v1261 = vsub.f32 1.5, %v1260
        %v1262 = vmul.f32 %v1257, %v1261
        %vm1263 = vweird.f32 %v1246
        %vm1264 = vweird.f32 %v1257
        %vm1265 = vmor %vm1263, %vm1264
        %v1266 = vsel %vm1265, %v1257, %v1262
        %v1267 = vmul.f32 %v1233, %v1256
        %v1268 = vmul.f32 %v1234, %v1266
        %v1269 = vperm.slane %v480, 3
        %v1270 = vmul.f32 %v1267, %v1269
        %v1271 = vmul.f32 %v1268, %v1269
        %v1272 = vperm.slane %v480, 4
        %v1273 = vadd.f32 %v1270, %v1272
        %v1274 = vadd.f32 %v1271, %v1272
        %v1276 = vperm.slane %v493, 0
        %v1279 = vsel %vm516, %v1273, 0
        %v1282 = vsel %vm516, %v1274, 0
        %1284 = vmatpush.msra.mxu0 0.0
        %1285 = vmatpush.msra.mxu0 0.0
        %1286 = vmatpush.msra.mxu0 0.0
        %1287 = vmatpush.msra.mxu0 0.0
        %1288 = vmatpush.msra.mxu0 0.0
        %1289 = vmatpush.msra.mxu0 0.0
        %1290 = vmatpush.msra.mxu0 0.0
        %1291 = vmatpush.msra.mxu0 0.0
        %1292 = vmatpush.msra.mxu0 0.0
        %1293 = vmatpush.msra.mxu0 0.0
        %1294 = vmatpush.msra.mxu0 0.0
        %1295 = vmatpush.msra.mxu0 0.0
        %1296 = vmatpush.msra.mxu0 %v492
        %1297 = vmatpush.msra.mxu0 %v491
        %1298 = vmatpush.msra.mxu0 %v490
        %1299 = vmatpush.msra.mxu0 %v489
        %1300 = vmatmul.f32.gmra.mxu0 %v1279
        %v1301 = vpop.f32.mrf.mxu0
        %v1302 = vadd.f32 %v1276, %v1301
        %1303 = vmatmul.f32.gmra.mxu0 %v1282
        %v1304 = vpop.f32.mrf.mxu0
        %v1305 = vadd.f32 %v1276, %v1304
        %1306 = vdwg.mxu0
        %v1307 = vmax.f32 %v1302, 0.0
        %v1308 = vmax.f32 %v1305, 0.0
        %v1309 = vperm.slane %v480, 5
        %1310 = vmatpush.msra.mxu0 %v509
        %1311 = vmatpush.msra.mxu0 %v508
        %1312 = vmatpush.msra.mxu0 %v507
        %1313 = vmatpush.msra.mxu0 %v506
        %1314 = vmatpush.msra.mxu0 %v505
        %1315 = vmatpush.msra.mxu0 %v504
        %1316 = vmatpush.msra.mxu0 %v503
        %1317 = vmatpush.msra.mxu0 %v502
        %1318 = vmatpush.msra.mxu0 %v501
        %1319 = vmatpush.msra.mxu0 %v500
        %1320 = vmatpush.msra.mxu0 %v499
        %1321 = vmatpush.msra.mxu0 %v498
        %1322 = vmatpush.msra.mxu0 %v497
        %1323 = vmatpush.msra.mxu0 %v496
        %1324 = vmatpush.msra.mxu0 %v495
        %1325 = vmatpush.msra.mxu0 %v494
        %1326 = vmatmul.f32.gmra.mxu0 %v1307
        %v1327 = vpop.f32.mrf.mxu0
        %v1328 = vadd.f32 %v1309, %v1327
        %1329 = vmatmul.f32.gmra.mxu0 %v1308
        %v1330 = vpop.f32.mrf.mxu0
        %v1331 = vadd.f32 %v1309, %v1330
        %1332 = vdwg.mxu0
        %v1333 = vadd.f32 %v1223, %v1328
        %v1334 = vadd.f32 %v1224, %v1331
        %1335 = vst.msk [vmem:[#allocation2] sm:$0xff] %vm516, %v1333
        %1336 = vst.msk [vmem:[#allocation2 + $0x8] sm:$0xff] %vm516, %v1334
        %p1337 = scmp.eq.s32.totalorder %s26, 1
        // Predicated region
        $region61: #{tpu_custom_call.1} parent=55 // pred_check
          %p1338 = pneg %p1337
        $region62: #{tpu_custom_call.1} parent=55 // pred_check_branch
          %1340 = sbr.rel (%p1338) target = $region64
        $region63: #{tpu_custom_call.1} parent=55 // pred_region
          %v1341 = vld [vmem:[%s2] sm:$0x1]
          %v1342 = vld [vmem:[%s2 + $0x1] sm:$0x1]
          %v1343 = vsel %vm516, %v1333, 0.0
          %1344 = vadd.xlane.f32.xlu0 %v1343
          %v1345 = vpop.xlane.xlu0 %1344
          %v1346 = vsel %vm516, %v1334, 0.0
          %1347 = vadd.xlane.f32.xlu0 %v1346
          %v1348 = vpop.xlane.xlu0 %1347
          %v1349 = vmul.f32 %v1345, %v529
          %v1350 = vmul.f32 %v1348, %v529
          %v1351 = vsub.f32 %v1333, %v1349
          %v1352 = vsub.f32 %v1334, %v1350
          %v1353 = vmul.f32 %v1351, %v1351
          %v1354 = vmul.f32 %v1352, %v1352
          %v1355 = vsel %vm516, %v1353, 0.0
          %1356 = vadd.xlane.f32.xlu0 %v1355
          %v1357 = vpop.xlane.xlu0 %1356
          %v1358 = vsel %vm516, %v1354, 0.0
          %1359 = vadd.xlane.f32.xlu0 %v1358
          %v1360 = vpop.xlane.xlu0 %1359
          %v1361 = vmul.f32 %v1357, %v529
          %v1362 = vmul.f32 %v1360, %v529
          %v1363 = vadd.f32 %v1361, 1e-05
          %v1364 = vadd.f32 %v1362, 1e-05
          %v1365 = vrsqrt.pop %v1363
          %v1366 = vmul.f32 %v1365, %v1363
          %v1367 = vmul.f32 %v1366, %v1365
          %v1368 = vmul.f32 0.5, %v1367
          %v1369 = vsub.f32 1.5, %v1368
          %v1370 = vmul.f32 %v1365, %v1369
          %vm1371 = vweird.f32 %v1363
          %vm1372 = vweird.f32 %v1365
          %vm1373 = vmor %vm1371, %vm1372
          %v1374 = vsel %vm1373, %v1365, %v1370
          %v1375 = vrsqrt.pop %v1364
          %v1376 = vmul.f32 %v1375, %v1364
          %v1377 = vmul.f32 %v1376, %v1375
          %v1378 = vmul.f32 0.5, %v1377
          %v1379 = vsub.f32 1.5, %v1378
          %v1380 = vmul.f32 %v1375, %v1379
          %vm1381 = vweird.f32 %v1364
          %vm1382 = vweird.f32 %v1375
          %vm1383 = vmor %vm1381, %vm1382
          %v1384 = vsel %vm1383, %v1375, %v1380
          %v1385 = vmul.f32 %v1351, %v1374
          %v1386 = vmul.f32 %v1352, %v1384
          %v1387 = vperm.slane %v1341, 0
          %v1388 = vmul.f32 %v1385, %v1387
          %v1389 = vmul.f32 %v1386, %v1387
          %v1390 = vperm.slane %v1342, 0
          %v1391 = vadd.f32 %v1388, %v1390
          %v1392 = vadd.f32 %v1389, %v1390
          %vm1393 = vcmask 261127
          %1394 = vst.msk [vmem:[#allocation4 - $0x7] sm:$0x80] %vm1393, %v1391
          %1395 = vst.msk [vmem:[#allocation4 - $0x6] sm:$0x80] %vm1393, %v1392
        $region64: #{tpu_custom_call.1} parent=55 // pred_fallthru
          _
        // Predicated region
        $region65: #{tpu_custom_call.1} parent=55 // pred_check
          %p1396 = pneg %p280
        $region66: #{tpu_custom_call.1} parent=55 // pred_check_branch
          %1398 = sbr.rel (%p1396) target = $region68
        $region67: #{tpu_custom_call.1} parent=55 // pred_region
          %s1399 = smul.u32 2, %s25
          %1401 = vsyncadd [#allocation5], 0
          %s1402 = scalar_lea.hbm %s9, %s1399
          %s1403 = sshll.u32 [#allocation4], 4
          %s1404 = int_to_ptr.vmem [resolvable:$true] %s1403
          %s1405 = sshll.u32 %s1402, 4
          %s1406 = int_to_ptr.hbm [resolvable:$true] %s1405
          %1411 = dma.vmem_to_hbm [thread:$0]  %s1404, 32, %s1406, [#allocation5], 16, 16, 1
        $region68: #{tpu_custom_call.1} parent=55 // pred_fallthru
          _
        // Predicated region
        $region69: #{tpu_custom_call.1} parent=55 // pred_check
          %p1412 = pneg %p280
        $region70: #{tpu_custom_call.1} parent=55 // pred_check_branch
          %1414 = sbr.rel (%p1412) target = $region72
        $region71: #{tpu_custom_call.1} parent=55 // pred_region
          %1416 = dma.done [#allocation5], 32
        $region72: #{tpu_custom_call.1} parent=55 // pred_fallthru
          _
      $region56: #{tpu_custom_call.1} parent=5 // pred_fallthru
        _
      %p1417 = scmp.le.s32.totalorder 2, %s16
      // Predicated region
      $region73: #{tpu_custom_call.1} parent=5 // pred_check
        %p1418 = pneg %p1417
      $region74: #{tpu_custom_call.1} parent=5 // pred_check_branch
        %1420 = sbr.rel (%p1418) target = $region76
      $region75: #{tpu_custom_call.1} parent=5 // pred_region
        %s1421 = ssub.s32 %s16, 2
      $region76: #{tpu_custom_call.1} parent=5 // pred_fallthru
        _
    $region6: #{tpu_custom_call.1} parent=1 // loop_footer
      %s20 = sadd.s32 1, %s16
    $region7: #{tpu_custom_call.1} parent=1 // loop_footer_branch
      %15 = sbr.rel target = $region3
    $region8: #{tpu_custom_call.1} parent=1 // loop_exit
      _
    %1422 = vsyncpa [#allocation5], 1
    %s1423 = scalar_lea.sflag [#allocation5], 1
    %1424 = vsyncpa %s1423, 1

</llo_original>
